<compile_context>
chip_gen: v7x
topology: tpu7x:2x2x1
jax: 0.10.0
libtpu: 0.0.40
codegen_flags: <defaults>
</compile_context>

<pallas_src>
import functools

import jax
import jax.numpy as jnp
from jax.experimental import pallas as pl
from jax.experimental.pallas import tpu as pltpu

_MXU_DTYPE = jnp.bfloat16                 # MXU operand / activation storage dtype


# ----------------------------------------------------------------------------
# Per-generation tuning
# ----------------------------------------------------------------------------

@functools.lru_cache(maxsize=None)
def _tpu_config():
    kind = ""
    try:
        kind = jax.devices()[0].device_kind.lower()
    except Exception:
        pass
    vmem_phys = None
    try:
        vmem_phys = int(pltpu.get_tpu_info().vmem_capacity_bytes)
    except Exception:
        vmem_phys = None
    if vmem_phys is None:
        # v7x has 64 MiB per TensorCore; v4/v5e/v6e have 128 MiB.
        vmem_phys = 64 * 1024 * 1024 if "7" in kind else 128 * 1024 * 1024
    vmem_limit = min(int(vmem_phys * 0.75), 100 * 1024 * 1024)
    is_v5e = ("v5 lite" in kind) or ("v5e" in kind) or ("v5lite" in kind)
    tc_max = 128 if is_v5e else 256       # 256-wide MXU on v6e/v7x, 128 on v5e
    return {"vmem_limit": vmem_limit, "tc_max": tc_max}


def _cparams(dimension_semantics, cfg):
    return pltpu.CompilerParams(dimension_semantics=dimension_semantics,
                                vmem_limit_bytes=cfg["vmem_limit"])


def _round_up(x, m):
    return -(-x // m) * m


def _divisors(n):
    out = set()
    d = 1
    while d * d <= n:
        if n % d == 0:
            out.add(d)
            out.add(n // d)
        d += 1
    return sorted(out)


def _pick_divisor(n, cap, align=1):
    ok = [d for d in _divisors(n) if d % align == 0 or d == n]
    fit = [d for d in ok if d <= max(1, cap)]
    return fit[-1] if fit else ok[0]


def _pick_conv_row_tile(Ho, Wop, K, n_phase, halo, tc, kh_sz, budget):
    """Largest divisor of Ho whose double-buffered working set fits the budget."""
    best = 1
    wb = 2 * kh_sz * K * tc * 2                    # double-buffered weight block
    fixed = wb + 4 * 8 * tc * 4 * 2                # small stats blocks (generous)
    for rt in _divisors(Ho):
        xb = 2 * n_phase * (rt + halo) * Wop * K * 2
        yb = 2 * rt * Wop * tc * 2
        accb = rt * Wop * tc * 4
        if xb + yb + accb + fixed <= budget:
            best = max(best, rt)
    return best


def _perm_index_map(order, want):
    """index_map that permutes grid axes named in `order` into block indices."""
    def index_map(*idx):
        env = dict(zip(order, idx))
        return tuple(env[w] if w is not None else 0 for w in want)
    return index_map


# ----------------------------------------------------------------------------
# Pallas kernels
# ----------------------------------------------------------------------------

def _conv_bn_stats_kernel(x_ref, w_ref, y_ref, s_ref, q_ref, acc_ref,
                          *, taps, rows_out):
    """Shifted MXU matmuls over the KH kernel-row taps + fused BN moments.

    x_ref: (n_phase, 1, 1, rows_blk, K) bf16   row-tile of the patch layout
    w_ref: (KH, K, tc)                   bf16
    y_ref: (1, rows_out, tc)             bf16  pre-BN conv output (row tile)
    s_ref, q_ref: (1, 1, 1, tc)          f32   partial channel sum / sumsq
    acc_ref: (rows_out, tc)              f32   VMEM scratch accumulator
    """
    for i, (ph, off) in enumerate(taps):            # static unrolled (KH <= 3)
        a = x_ref[ph, 0, 0, off:off + rows_out, :]  # sublane-aligned static slice
        p = jnp.dot(a, w_ref[i], preferred_element_type=jnp.float32)
        if i == 0:
            acc_ref[...] = p
        else:
            acc_ref[...] += p
    acc = acc_ref[...]
    y_ref[0] = acc.astype(y_ref.dtype)              # bf16 writeback
    s_ref[0, 0] = jnp.sum(acc, axis=0, keepdims=True)
    q_ref[0, 0] = jnp.sum(acc * acc, axis=0, keepdims=True)


def _bn_affine_kernel(y_ref, sc_ref, sh_ref, o_ref, *, relu):
    v = y_ref[...].astype(jnp.float32) * sc_ref[...] + sh_ref[...]
    if relu:
        v = jnp.maximum(v, 0.0)
    o_ref[...] = v.astype(o_ref.dtype)


def _bn_affine_res_kernel(y_ref, sc_ref, sh_ref, r_ref, o_ref, *, relu):
    v = (y_ref[...].astype(jnp.float32) * sc_ref[...] + sh_ref[...]
         + r_ref[...].astype(jnp.float32))
    if relu:
        v = jnp.maximum(v, 0.0)
    o_ref[...] = v.astype(o_ref.dtype)


def _bn_affine_crop_kernel(y_ref, sc_ref, sh_ref, o_ref, *, relu, wo):
    # y has Wop (>= Wo) padded columns; crop to Wo while applying the affine.
    v = y_ref[0, :, :wo, :].astype(jnp.float32) * sc_ref[0, 0] + sh_ref[0, 0]
    if relu:
        v = jnp.maximum(v, 0.0)
    o_ref[0] = v.astype(o_ref.dtype)


def _bn_affine_crop_res_kernel(y_ref, sc_ref, sh_ref, r_ref, o_ref, *, relu, wo):
    v = (y_ref[0, :, :wo, :].astype(jnp.float32) * sc_ref[0, 0] + sh_ref[0, 0]
         + r_ref[0].astype(jnp.float32))
    if relu:
        v = jnp.maximum(v, 0.0)
    o_ref[0] = v.astype(o_ref.dtype)


def _maxpool_kernel(x_ref, o_ref, *, taps, out_hw):
    # running max over the 9 static windows, fully in bf16
    Ho, Wo = out_hw
    r = None
    for (ph, dh, dw) in taps:                       # static unrolled (9 taps)
        w = x_ref[ph, 0, dh:dh + Ho, dw:dw + Wo, :]
        r = w if r is None else jnp.maximum(r, w)
    o_ref[0] = r.astype(o_ref.dtype)


def _fc_kernel(x_ref, w_ref, b_ref, o_ref):
    o_ref[...] = jnp.dot(x_ref[...], w_ref[...],
                         preferred_element_type=jnp.float32) + b_ref[...]


# ----------------------------------------------------------------------------
# Conv operand layout (XLA glue): W-only patch columns, H-phase split, row tiles
# ----------------------------------------------------------------------------

def _build_conv_operands(x_nhwc, kh_sz, kw_sz, stride, padding,
                         Ho, Wo, Wop, halo, phase_ids, rt):
    N, H, W, Cin = x_nhwc.shape
    K = kw_sz * Cin
    xp = x_nhwc
    if padding:
        xp = jnp.pad(x_nhwc,
                     ((0, 0), (padding, padding), (padding, padding), (0, 0)))
    # patch columns along W only (dup ~KW/stride), zero-padded to Wop (mult of 8)
    cols = [xp[:, :, kw: kw + stride * Wo: stride, :] for kw in range(kw_sz)]
    b = jnp.stack(cols, axis=3).reshape(N, xp.shape[1], Wo, K)
    if Wop > Wo:
        b = jnp.pad(b, ((0, 0), (0, 0), (0, Wop - Wo), (0, 0)))
    # split H into `stride` phases so every tap is a unit-stride row window
    hq = Ho + halo
    phases = []
    for p in phase_ids:
        bp = b[:, p::stride]
        if bp.shape[1] < hq:
            bp = jnp.pad(bp, ((0, 0), (0, hq - bp.shape[1]), (0, 0), (0, 0)))
        phases.append(bp[:, :hq])
    ph = jnp.stack(phases, axis=0)                  # (n_phase, N, hq, Wop, K)
    # pre-cut row tiles (halo rows duplicated, <= halo/rt overhead)
    n_rows = Ho // rt
    if n_rows == 1:
        tiles = ph[:, None]
    else:
        tiles = jnp.stack([ph[:, :, r * rt: r * rt + rt + halo]
                           for r in range(n_rows)], axis=1)
    tiles = tiles.reshape(len(phase_ids), n_rows, N, (rt + halo) * Wop, K)
    taps = tuple((phase_ids.index(kh % stride), (kh // stride) * Wop)
                 for kh in range(kh_sz))
    return tiles.astype(_MXU_DTYPE), taps


# ----------------------------------------------------------------------------
# Layer wrappers
# ----------------------------------------------------------------------------

def conv2d_bn_stats(x_nhwc, w, stride, padding, cfg):
    """w: (KH, KW*Cin, Cout) bf16 (pre-laid-out at init).
    Returns (y (N, Ho*Wop, Cout) bf16, (sum, sumsq) partials, (Ho, Wo, Wop))."""
    N, H, W, Cin = x_nhwc.shape
    kh_sz, kwcin, cout = w.shape
    kw_sz = kwcin // Cin
    K = kw_sz * Cin
    Hp, Wp = H + 2 * padding, W + 2 * padding
    Ho = (Hp - kh_sz) // stride + 1
    Wo = (Wp - kw_sz) // stride + 1
    Wop = _round_up(Wo, 8)
    halo = (kh_sz - 1) // stride
    phase_ids = sorted({kh % stride for kh in range(kh_sz)})
    n_phase = len(phase_ids)

    tc = min(cout, cfg["tc_max"])                  # 256 on v6e/v7x, 128 on v5e
    n_co = cout // tc
    budget = int(cfg["vmem_limit"] * 0.6)
    rt = _pick_conv_row_tile(Ho, Wop, K, n_phase, halo, tc, kh_sz, budget)
    n_rows = Ho // rt
    rows_out = rt * Wop
    rows_blk = (rt + halo) * Wop

    tiles, taps = _build_conv_operands(x_nhwc, kh_sz, kw_sz, stride, padding,
                                       Ho, Wo, Wop, halo, phase_ids, rt)

    # Grid ordering: keep the heavier operand resident over the inner axes.
    x_bytes_img = n_phase * (Ho + halo) * Wop * K * 2
    w_bytes = kh_sz * K * cout * 2
    if w_bytes > x_bytes_img:
        order = ("c", "r", "n")                    # weights fetched once per call
    else:
        order = ("n", "r", "c") if N >= n_rows else ("r", "n", "c")
    sizes = {"n": N, "r": n_rows, "c": n_co}
    grid = tuple(sizes[a] for a in order)

    kern = functools.partial(_conv_bn_stats_kernel, taps=taps, rows_out=rows_out)
    y, s, q = pl.pallas_call(
        kern,
        out_shape=(jax.ShapeDtypeStruct((N, Ho * Wop, cout), _MXU_DTYPE),
                   jax.ShapeDtypeStruct((N, n_rows, 1, cout), jnp.float32),
                   jax.ShapeDtypeStruct((N, n_rows, 1, cout), jnp.float32)),
        grid=grid,
        in_specs=[
            pl.BlockSpec((n_phase, 1, 1, rows_blk, K),
                         _perm_index_map(order, (None, "r", "n", None, None))),
            pl.BlockSpec((kh_sz, K, tc),
                         _perm_index_map(order, (None, None, "c"))),
        ],
        out_specs=(
            pl.BlockSpec((1, rows_out, tc),
                         _perm_index_map(order, ("n", "r", "c"))),
            pl.BlockSpec((1, 1, 1, tc),
                         _perm_index_map(order, ("n", "r", None, "c"))),
            pl.BlockSpec((1, 1, 1, tc),
                         _perm_index_map(order, ("n", "r", None, "c"))),
        ),
        scratch_shapes=[pltpu.VMEM((rows_out, tc), jnp.float32)],
        compiler_params=_cparams(("parallel", "parallel", "parallel"), cfg),
    )(tiles, w)
    return y, (s, q), (Ho, Wo, Wop)


def batchnorm_affine(y, stats, gamma, beta, count, dims, cfg, *, relu,
                     res=None, eps=1e-5):
    """Training-mode BatchNorm2d affine (+ReLU, + optional fused residual).

    Uses the moments fused into the conv kernel; biased single-pass variance
    in f32 (clamped at 0).  Returns a (N, Ho, Wo, C) bf16 activation."""
    N, _, C = y.shape
    Ho, Wo, Wop = dims
    s, q = stats
    tot = jnp.sum(s, axis=(0, 1, 2))
    totq = jnp.sum(q, axis=(0, 1, 2))
    mean = tot / count
    var = jnp.maximum(totq / count - mean * mean, 0.0)
    scale_v = gamma * jax.lax.rsqrt(var + eps)
    shift_v = beta - mean * scale_v
    budget = int(cfg["vmem_limit"] * 0.5)

    if Wop == Wo:
        # lane-dense path; fold spatial pairs into lanes when C < 128
        L = Ho * Wo
        f = 1
        if C < 128 and 128 % C == 0 and L % (128 // C) == 0:
            f = 128 // C
        Cf, L2 = C * f, (Ho * Wo) // f
        y2 = y.reshape(N, L2, Cf)
        scale = jnp.tile(scale_v, f).reshape(1, 1, Cf)
        shift = jnp.tile(shift_v, f).reshape(1, 1, Cf)
        streams = 3 if res is None else 4
        lt = _pick_divisor(L2, budget // max(1, Cf * 2 * streams * 2), align=8)
        nlt = L2 // lt
        in_specs = [pl.BlockSpec((1, lt, Cf), lambda n, l: (n, l, 0)),
                    pl.BlockSpec((1, 1, Cf), lambda n, l: (0, 0, 0)),
                    pl.BlockSpec((1, 1, Cf), lambda n, l: (0, 0, 0))]
        args = [y2, scale, shift]
        if res is None:
            kern = functools.partial(_bn_affine_kernel, relu=relu)
        else:
            kern = functools.partial(_bn_affine_res_kernel, relu=relu)
            in_specs.append(pl.BlockSpec((1, lt, Cf), lambda n, l: (n, l, 0)))
            args.append(res.reshape(N, L2, Cf))
        out = pl.pallas_call(
            kern,
            out_shape=jax.ShapeDtypeStruct((N, L2, Cf), _MXU_DTYPE),
            grid=(N, nlt),
            in_specs=in_specs,
            out_specs=pl.BlockSpec((1, lt, Cf), lambda n, l: (n, l, 0)),
            compiler_params=_cparams(("parallel", "parallel"), cfg),
        )(*args)
        return out.reshape(N, Ho, Wo, C)

    # cropping path: drop the Wop-Wo zero columns while applying the affine
    y4 = y.reshape(N, Ho, Wop, C)
    scale = scale_v.reshape(1, 1, C)
    shift = shift_v.reshape(1, 1, C)
    streams = 2 if res is None else 3
    rh = _pick_divisor(Ho, budget // max(1, (Wop + Wo * streams) * C * 2 * 2))
    nrh = Ho // rh
    in_specs = [pl.BlockSpec((1, rh, Wop, C), lambda n, r: (n, r, 0, 0)),
                pl.BlockSpec((1, 1, C), lambda n, r: (0, 0, 0)),
                pl.BlockSpec((1, 1, C), lambda n, r: (0, 0, 0))]
    args = [y4, scale, shift]
    if res is None:
        kern = functools.partial(_bn_affine_crop_kernel, relu=relu, wo=Wo)
    else:
        kern = functools.partial(_bn_affine_crop_res_kernel, relu=relu, wo=Wo)
        in_specs.append(pl.BlockSpec((1, rh, Wo, C), lambda n, r: (n, r, 0, 0)))
        args.append(res)
    return pl.pallas_call(
        kern,
        out_shape=jax.ShapeDtypeStruct((N, Ho, Wo, C), _MXU_DTYPE),
        grid=(N, nrh),
        in_specs=in_specs,
        out_specs=pl.BlockSpec((1, rh, Wo, C), lambda n, r: (n, r, 0, 0)),
        compiler_params=_cparams(("parallel", "parallel"), cfg),
    )(*args)


def maxpool_3x3_s2_p1(x_nhwc, cfg):
    """3x3/s2/p1 max-pool: 4 stride-phases (1x copy) + in-kernel 9-tap max, bf16."""
    N, H, W, C = x_nhwc.shape
    kh_sz = kw_sz = 3
    s, pad = 2, 1
    Hp, Wp = H + 2 * pad, W + 2 * pad
    Ho = (Hp - kh_sz) // s + 1
    Wo = (Wp - kw_sz) // s + 1
    xp = jnp.pad(x_nhwc, ((0, 0), (pad, pad), (pad, pad), (0, 0)),
                 constant_values=-jnp.inf)
    hq, wq = Ho + (kh_sz - 1) // s, Wo + (kw_sz - 1) // s
    phase_ids = sorted({(kh % s, kw % s)
                        for kh in range(kh_sz) for kw in range(kw_sz)})
    phases = []
    for (p, q2) in phase_ids:
        xq = xp[:, p::s, q2::s, :]
        padh, padw = max(0, hq - xq.shape[1]), max(0, wq - xq.shape[2])
        if padh or padw:
            xq = jnp.pad(xq, ((0, 0), (0, padh), (0, padw), (0, 0)),
                         constant_values=-jnp.inf)
        phases.append(xq[:, :hq, :wq, :])
    phases = jnp.stack(phases, axis=0)                 # (4, N, hq, wq, C)
    taps = tuple((phase_ids.index((kh % s, kw % s)), kh // s, kw // s)
                 for kh in range(kh_sz) for kw in range(kw_sz))
    n_phase = len(phase_ids)
    # TODO(synk): C=64 lane-folding and conv1-BN->maxpool fusion left out;
    # the pool pass is small relative to the conv traffic.
    return pl.pallas_call(
        functools.partial(_maxpool_kernel, taps=taps, out_hw=(Ho, Wo)),
        out_shape=jax.ShapeDtypeStruct((N, Ho, Wo, C), x_nhwc.dtype),
        grid=(N,),
        in_specs=[pl.BlockSpec((n_phase, 1, hq, wq, C),
                               lambda n: (0, n, 0, 0, 0))],
        out_specs=pl.BlockSpec((1, Ho, Wo, C), lambda n: (n, 0, 0, 0)),
        compiler_params=_cparams(("parallel",), cfg),
    )(phases)


def fc_layer(x, w, b, cfg):
    M, K = x.shape
    _, C = w.shape
    return pl.pallas_call(
        _fc_kernel,
        out_shape=jax.ShapeDtypeStruct((M, C), jnp.float32),
        grid=(1,),
        in_specs=[pl.BlockSpec((M, K), lambda i: (0, 0)),
                  pl.BlockSpec((K, C), lambda i: (0, 0)),
                  pl.BlockSpec((1, C), lambda i: (0, 0))],
        out_specs=pl.BlockSpec((M, C), lambda i: (0, 0)),
        compiler_params=_cparams(("arbitrary",), cfg),
    )(x, w, b)


# ----------------------------------------------------------------------------
# ResNet blocks / forward
# ----------------------------------------------------------------------------

def basic_block(x_nhwc, p, cfg):
    """torchvision BasicBlock (expansion=1), activations kept bf16 NHWC."""
    N = x_nhwc.shape[0]
    stride = p['stride']

    y1, st1, d1 = conv2d_bn_stats(x_nhwc, p['conv1'], stride, 1, cfg)
    Ho, Wo, _ = d1
    cnt = N * Ho * Wo
    a1 = batchnorm_affine(y1, st1, p['bn1_g'], p['bn1_b'], cnt, d1, cfg,
                          relu=True)

    y2, st2, d2 = conv2d_bn_stats(a1, p['conv2'], 1, 1, cfg)

    if p['downsample']:
        yd, std, dd = conv2d_bn_stats(x_nhwc, p['ds_conv'], stride, 0, cfg)
        idr = batchnorm_affine(yd, std, p['ds_bn_g'], p['ds_bn_b'], cnt, dd,
                               cfg, relu=False)
    else:
        idr = x_nhwc

    # bn2 + residual add + ReLU fused in one elementwise kernel
    return batchnorm_affine(y2, st2, p['bn2_g'], p['bn2_b'], cnt, d2, cfg,
                            relu=True, res=idr)


def init_resnet18_params(key, num_classes=10, layers_cfg=(2, 2, 2, 2)):
    counter = [0]

    def nk():
        counter[0] += 1
        return jax.random.fold_in(key, counter[0])

    def conv_w(cout, cin, k):
        # pre-laid-out for the Pallas conv kernel: (KH, KW*Cin, Cout), bf16
        fan_in = cin * k * k
        w = jax.random.normal(nk(), (k, k, cin, cout), jnp.float32) * \
            jnp.sqrt(2.0 / fan_in)
        return w.reshape(k, k * cin, cout).astype(_MXU_DTYPE)

    params = {
        'conv1': conv_w(64, 3, 3),
        'bn1_g': jnp.ones((64,), jnp.float32),
        'bn1_b': jnp.zeros((64,), jnp.float32),
    }
    in_ch = 64
    layer_list = []
    for li, (out_ch, nblocks) in enumerate(zip((64, 128, 256, 512), layers_cfg)):
        first_stride = 1 if li == 0 else 2
        blocks = []
        for bi in range(nblocks):
            s = first_stride if bi == 0 else 1
            ds = (s != 1) or (in_ch != out_ch)
            blk = {
                'stride': s,
                'downsample': ds,
                'conv1': conv_w(out_ch, in_ch, 3),
                'bn1_g': jnp.ones((out_ch,), jnp.float32),
                'bn1_b': jnp.zeros((out_ch,), jnp.float32),
                'conv2': conv_w(out_ch, out_ch, 3),
                'bn2_g': jnp.ones((out_ch,), jnp.float32),
                'bn2_b': jnp.zeros((out_ch,), jnp.float32),
            }
            if ds:
                blk['ds_conv'] = conv_w(out_ch, in_ch, 1)
                blk['ds_bn_g'] = jnp.ones((out_ch,), jnp.float32)
                blk['ds_bn_b'] = jnp.zeros((out_ch,), jnp.float32)
            blocks.append(blk)
            in_ch = out_ch
        layer_list.append(blocks)
    params['layers'] = layer_list
    # FC weight pre-transposed to (512, num_classes) at init (hoisted .T).
    params['fc_w'] = jax.random.normal(nk(), (512, num_classes), jnp.float32) * \
        jnp.sqrt(1.0 / 512)
    params['fc_b'] = jnp.zeros((1, num_classes), jnp.float32)
    return params


def resnet18_forward(x_nchw, params):
    cfg = _tpu_config()
    if x_nchw.ndim == 3:                             # x.unsqueeze(1) equivalent
        x_nchw = x_nchw[:, None, :, :]
    x = jnp.transpose(x_nchw, (0, 2, 3, 1)).astype(_MXU_DTYPE)   # NCHW -> NHWC
    N = x.shape[0]

    y, st, d0 = conv2d_bn_stats(x, params['conv1'], 1, 1, cfg)
    Ho, Wo, _ = d0
    x = batchnorm_affine(y, st, params['bn1_g'], params['bn1_b'], N * Ho * Wo,
                         d0, cfg, relu=True)

    x = maxpool_3x3_s2_p1(x, cfg)

    for layer in params['layers']:
        for blk in layer:
            x = basic_block(x, blk, cfg)

    Nb, Hf, Wf, C = x.shape
    # TODO(synk): AdaptiveAvgPool2d((1,1)) kept as a tiny JAX mean reduction;
    # not worth a dedicated Pallas kernel at this spatial size.
    feat = x.reshape(Nb, Hf * Wf, C).astype(jnp.float32).mean(axis=1)   # (N, 512)
    return fc_layer(feat, params['fc_w'], params['fc_b'], cfg)


if __name__ == "__main__":
    key = jax.random.PRNGKey(0)
    params = init_resnet18_params(jax.random.fold_in(key, 1), num_classes=10)
    x = jax.random.normal(jax.random.fold_in(key, 2), (2, 3, 16, 16), jnp.float32)
    out = resnet18_forward(x, params)
    out = jax.block_until_ready(out)
    assert out.shape == (2, 10) and out.dtype == jnp.float32
    print("KERNEL_OK")
</pallas_src>

<mosaic_0001>
module attributes {stable_mosaic.version = 11 : i64} {
  func.func @_conv_bn_stats_kernel(%arg0: i32, %arg1: i32, %arg2: i32, %arg3: memref<1x1x1x288x9xbf16, #tpu.memory_space<vmem>>, %arg4: memref<3x9x64xbf16, #tpu.memory_space<vmem>>, %arg5: memref<1x256x64xbf16, #tpu.memory_space<vmem>>, %arg6: memref<1x1x1x64xf32, #tpu.memory_space<vmem>>, %arg7: memref<1x1x1x64xf32, #tpu.memory_space<vmem>>, %arg8: memref<256x64xf32, #tpu.memory_space<vmem>>) attributes {dimension_semantics = [#tpu.dimension_semantics<parallel>, #tpu.dimension_semantics<parallel>, #tpu.dimension_semantics<parallel>], iteration_bounds = array<i64: 2, 1, 1>, scalar_prefetch = 0 : i64, scratch_operands = 1 : i64, tpu.core_type = #tpu.core_type<tc>, window_params = [{transform_indices = @transform_0, window_bounds = array<i64: 1, 1, 1, 288, 9>}, {transform_indices = @transform_1, window_bounds = array<i64: 3, 9, 64>}, {transform_indices = @transform_2, window_bounds = array<i64: 1, 256, 64>}, {transform_indices = @transform_3, window_bounds = array<i64: 1, 1, 1, 64>}, {transform_indices = @transform_4, window_bounds = array<i64: 1, 1, 1, 64>}]} {
    %c0 = arith.constant 0 : index
    %c0_0 = arith.constant 0 : index
    %c0_1 = arith.constant 0 : index
    %c0_2 = arith.constant 0 : index
    %c0_3 = arith.constant 0 : index
    %0 = vector.load %arg3[%c0, %c0_0, %c0_1, %c0_2, %c0_3] : memref<1x1x1x288x9xbf16, #tpu.memory_space<vmem>>, vector<1x1x1x256x9xbf16>
    %1 = vector.shape_cast %0 : vector<1x1x1x256x9xbf16> to vector<256x9xbf16>
    %c0_4 = arith.constant 0 : index
    %c0_5 = arith.constant 0 : index
    %c0_6 = arith.constant 0 : index
    %2 = vector.load %arg4[%c0_4, %c0_5, %c0_6] : memref<3x9x64xbf16, #tpu.memory_space<vmem>>, vector<1x9x64xbf16>
    %3 = vector.shape_cast %2 : vector<1x9x64xbf16> to vector<9x64xbf16>
    %cst = arith.constant dense<0.000000e+00> : vector<256x64xf32>
    %4 = tpu.matmul %1, %3, %cst {dimension_numbers = #tpu.dot_dimension_numbers<[1], [0], [0], [1], [0, 0, 1, 1], [], []>} : vector<256x9xbf16>, vector<9x64xbf16>, vector<256x64xf32> -> vector<256x64xf32>
    %c0_7 = arith.constant 0 : index
    %c0_8 = arith.constant 0 : index
    %5 = vector.load %arg8[%c0_7, %c0_8] : memref<256x64xf32, #tpu.memory_space<vmem>>, vector<256x64xf32>
    tpu.vector_store %arg8[%c0_7, %c0_8], %4 {strides = array<i32>} : memref<256x64xf32, #tpu.memory_space<vmem>>, vector<256x64xf32>,
    %c0_9 = arith.constant 0 : index
    %c0_10 = arith.constant 0 : index
    %c0_11 = arith.constant 0 : index
    %c16 = arith.constant 16 : index
    %c0_12 = arith.constant 0 : index
    %6 = vector.load %arg3[%c0_9, %c0_10, %c0_11, %c16, %c0_12] : memref<1x1x1x288x9xbf16, #tpu.memory_space<vmem>>, vector<1x1x1x256x9xbf16>
    %7 = vector.shape_cast %6 : vector<1x1x1x256x9xbf16> to vector<256x9xbf16>
    %c1 = arith.constant 1 : index
    %c0_13 = arith.constant 0 : index
    %c0_14 = arith.constant 0 : index
    %8 = vector.load %arg4[%c1, %c0_13, %c0_14] : memref<3x9x64xbf16, #tpu.memory_space<vmem>>, vector<1x9x64xbf16>
    %9 = vector.shape_cast %8 : vector<1x9x64xbf16> to vector<9x64xbf16>
    %cst_15 = arith.constant dense<0.000000e+00> : vector<256x64xf32>
    %10 = tpu.matmul %7, %9, %cst_15 {dimension_numbers = #tpu.dot_dimension_numbers<[1], [0], [0], [1], [0, 0, 1, 1], [], []>} : vector<256x9xbf16>, vector<9x64xbf16>, vector<256x64xf32> -> vector<256x64xf32>
    %c0_16 = arith.constant 0 : index
    %c0_17 = arith.constant 0 : index
    %11 = vector.load %arg8[%c0_16, %c0_17] : memref<256x64xf32, #tpu.memory_space<vmem>>, vector<256x64xf32>
    %12 = arith.addf %11, %10 : vector<256x64xf32>
    %c0_18 = arith.constant 0 : index
    %c0_19 = arith.constant 0 : index
    %13 = vector.load %arg8[%c0_18, %c0_19] : memref<256x64xf32, #tpu.memory_space<vmem>>, vector<256x64xf32>
    tpu.vector_store %arg8[%c0_18, %c0_19], %12 {strides = array<i32>} : memref<256x64xf32, #tpu.memory_space<vmem>>, vector<256x64xf32>,
    %c0_20 = arith.constant 0 : index
    %c0_21 = arith.constant 0 : index
    %c0_22 = arith.constant 0 : index
    %c32 = arith.constant 32 : index
    %c0_23 = arith.constant 0 : index
    %14 = vector.load %arg3[%c0_20, %c0_21, %c0_22, %c32, %c0_23] : memref<1x1x1x288x9xbf16, #tpu.memory_space<vmem>>, vector<1x1x1x256x9xbf16>
    %15 = vector.shape_cast %14 : vector<1x1x1x256x9xbf16> to vector<256x9xbf16>
    %c2 = arith.constant 2 : index
    %c0_24 = arith.constant 0 : index
    %c0_25 = arith.constant 0 : index
    %16 = vector.load %arg4[%c2, %c0_24, %c0_25] : memref<3x9x64xbf16, #tpu.memory_space<vmem>>, vector<1x9x64xbf16>
    %17 = vector.shape_cast %16 : vector<1x9x64xbf16> to vector<9x64xbf16>
    %cst_26 = arith.constant dense<0.000000e+00> : vector<256x64xf32>
    %18 = tpu.matmul %15, %17, %cst_26 {dimension_numbers = #tpu.dot_dimension_numbers<[1], [0], [0], [1], [0, 0, 1, 1], [], []>} : vector<256x9xbf16>, vector<9x64xbf16>, vector<256x64xf32> -> vector<256x64xf32>
    %c0_27 = arith.constant 0 : index
    %c0_28 = arith.constant 0 : index
    %19 = vector.load %arg8[%c0_27, %c0_28] : memref<256x64xf32, #tpu.memory_space<vmem>>, vector<256x64xf32>
    %20 = arith.addf %19, %18 : vector<256x64xf32>
    %c0_29 = arith.constant 0 : index
    %c0_30 = arith.constant 0 : index
    %21 = vector.load %arg8[%c0_29, %c0_30] : memref<256x64xf32, #tpu.memory_space<vmem>>, vector<256x64xf32>
    tpu.vector_store %arg8[%c0_29, %c0_30], %20 {strides = array<i32>} : memref<256x64xf32, #tpu.memory_space<vmem>>, vector<256x64xf32>,
    %c0_31 = arith.constant 0 : index
    %c0_32 = arith.constant 0 : index
    %22 = vector.load %arg8[%c0_31, %c0_32] : memref<256x64xf32, #tpu.memory_space<vmem>>, vector<256x64xf32>
    %23 = arith.truncf %22 : vector<256x64xf32> to vector<256x64xbf16>
    %c0_33 = arith.constant 0 : index
    %c0_34 = arith.constant 0 : index
    %c0_35 = arith.constant 0 : index
    %24 = vector.load %arg5[%c0_33, %c0_34, %c0_35] : memref<1x256x64xbf16, #tpu.memory_space<vmem>>, vector<1x256x64xbf16>
    %25 = vector.shape_cast %24 : vector<1x256x64xbf16> to vector<256x64xbf16>
    %26 = vector.shape_cast %23 : vector<256x64xbf16> to vector<1x256x64xbf16>
    tpu.vector_store %arg5[%c0_33, %c0_34, %c0_35], %26 {strides = array<i32>} : memref<1x256x64xbf16, #tpu.memory_space<vmem>>, vector<1x256x64xbf16>,
    %cst_36 = arith.constant dense<0.000000e+00> : vector<64xf32>
    %27 = vector.multi_reduction <add>, %22, %cst_36 [0] : vector<256x64xf32> to vector<64xf32>
    %28 = vector.shape_cast %27 : vector<64xf32> to vector<1x64xf32>
    %c0_37 = arith.constant 0 : index
    %c0_38 = arith.constant 0 : index
    %c0_39 = arith.constant 0 : index
    %c0_40 = arith.constant 0 : index
    %29 = vector.load %arg6[%c0_37, %c0_38, %c0_39, %c0_40] : memref<1x1x1x64xf32, #tpu.memory_space<vmem>>, vector<1x1x1x64xf32>
    %30 = vector.shape_cast %29 : vector<1x1x1x64xf32> to vector<1x64xf32>
    %31 = vector.shape_cast %28 : vector<1x64xf32> to vector<1x1x1x64xf32>
    tpu.vector_store %arg6[%c0_37, %c0_38, %c0_39, %c0_40], %31 {strides = array<i32>} : memref<1x1x1x64xf32, #tpu.memory_space<vmem>>, vector<1x1x1x64xf32>,
    %32 = arith.mulf %22, %22 : vector<256x64xf32>
    %cst_41 = arith.constant dense<0.000000e+00> : vector<64xf32>
    %33 = vector.multi_reduction <add>, %32, %cst_41 [0] : vector<256x64xf32> to vector<64xf32>
    %34 = vector.shape_cast %33 : vector<64xf32> to vector<1x64xf32>
    %c0_42 = arith.constant 0 : index
    %c0_43 = arith.constant 0 : index
    %c0_44 = arith.constant 0 : index
    %c0_45 = arith.constant 0 : index
    %35 = vector.load %arg7[%c0_42, %c0_43, %c0_44, %c0_45] : memref<1x1x1x64xf32, #tpu.memory_space<vmem>>, vector<1x1x1x64xf32>
    %36 = vector.shape_cast %35 : vector<1x1x1x64xf32> to vector<1x64xf32>
    %37 = vector.shape_cast %34 : vector<1x64xf32> to vector<1x1x1x64xf32>
    tpu.vector_store %arg7[%c0_42, %c0_43, %c0_44, %c0_45], %37 {strides = array<i32>} : memref<1x1x1x64xf32, #tpu.memory_space<vmem>>, vector<1x1x1x64xf32>,
    return
  }
  func.func @transform_0(%arg0: i32, %arg1: i32, %arg2: i32) -> (i32, i32, i32, i32, i32) {
    %c0_i32 = arith.constant 0 : i32
    %c0_i32_0 = arith.constant 0 : i32
    %c0_i32_1 = arith.constant 0 : i32
    %c0_i32_2 = arith.constant 0 : i32
    return %c0_i32, %arg1, %arg0, %c0_i32_0, %c0_i32_1 : i32, i32, i32, i32, i32
  }
  func.func @transform_1(%arg0: i32, %arg1: i32, %arg2: i32) -> (i32, i32, i32) {
    %c0_i32 = arith.constant 0 : i32
    %c0_i32_0 = arith.constant 0 : i32
    %c0_i32_1 = arith.constant 0 : i32
    return %c0_i32, %c0_i32_0, %arg2 : i32, i32, i32
  }
  func.func @transform_2(%arg0: i32, %arg1: i32, %arg2: i32) -> (i32, i32, i32) {
    %c0_i32 = arith.constant 0 : i32
    return %arg0, %arg1, %arg2 : i32, i32, i32
  }
  func.func @transform_3(%arg0: i32, %arg1: i32, %arg2: i32) -> (i32, i32, i32, i32) {
    %c0_i32 = arith.constant 0 : i32
    %c0_i32_0 = arith.constant 0 : i32
    return %arg0, %arg1, %c0_i32, %arg2 : i32, i32, i32, i32
  }
  func.func @transform_4(%arg0: i32, %arg1: i32, %arg2: i32) -> (i32, i32, i32, i32) {
    %c0_i32 = arith.constant 0 : i32
    %c0_i32_0 = arith.constant 0 : i32
    return %arg0, %arg1, %c0_i32, %arg2 : i32, i32, i32, i32
  }
}

</mosaic_0001>

<llo_original>
// kernel: tpu_custom_call.1
$region0: #{tpu_custom_call.1}
  #allocation0 [shape = 'u32[]', space=smem, size = 0x4, offset = 0x4, fixed_abs, tag = 'smem constant byte address 0x4 - core index']
  #allocation1 [shape = 'u32[144,128]{1,0:T(1,128)}', space=vmem, size = 0x12000, scoped, tag = 'internal scratch']
  #allocation2 [shape = 'f32[256,64]{1,0:T(8,128)}', space=vmem, size = 0x20000, scoped, tag = 'scratch operand']
  %s0 = inlined_call_operand.hbm [shape: bf16[1,1,2,288,9], index: 0, kind: input, shape index: {}]
  %s1 = inlined_call_operand.hbm [shape: bf16[3,9,64], index: 1, kind: input, shape index: {}]
  %s2 = inlined_call_operand.hbm [shape: bf16[2,256,64], index: 2, kind: output, shape index: {0}]
  %s3 = inlined_call_operand.hbm [shape: f32[2,1,1,64], index: 3, kind: output, shape index: {1}]
  %s4 = inlined_call_operand.hbm [shape: f32[2,1,1,64], index: 4, kind: output, shape index: {2}]
  %5 = xla_tuple %s2, %s3, %s4
  %s6 = sld [smem:[#allocation0]]
  $region65: #{tpu_custom_call.1} parent=0
    _
  %s8 = ssub.s32 1, %s6
  %s9 = scalar_select 0, %s8, %s6
  $region1: #{tpu_custom_call.1} parent=0
    #allocation3 [shape = 'u8[147456]{0}', space=vmem, size = 0x24000, scoped, tag = 'input window, operand 0']
    #allocation4 [shape = 's32[2]{0}', space=sflag, size = 0x8, scoped, tag = 'scoped memory for tpu_custom_call.1']
    #allocation5 [shape = 's32[2]{0}', space=sflag, size = 0x8, scoped, tag = 'scoped memory for tpu_custom_call.1']
    #allocation6 [shape = 'u8[12288]{0}', space=vmem, size = 0x3000, scoped, tag = 'input window, operand 1, single buffered']
    #allocation7 [shape = 's32[1]{0}', space=sflag, size = 0x4, scoped, tag = 'scoped memory for tpu_custom_call.1']
    #allocation8 [shape = 'u8[131072]{0}', space=vmem, size = 0x20000, scoped, tag = 'output window, operand 0']
    #allocation9 [shape = 'u8[1024]{0}', space=vmem, size = 0x400, scoped, tag = 'output window, operand 1']
    #allocation10 [shape = 's32[2]{0}', space=sflag, size = 0x8, scoped, tag = 'scoped memory for tpu_custom_call.1']
    #allocation11 [shape = 'u8[1024]{0}', space=vmem, size = 0x400, scoped, tag = 'output window, operand 2']
    %10 = vsyncpa [#allocation4], 0
    %s11 = scalar_lea.sflag [#allocation4], 1
    %12 = vsyncpa %s11, 0
    %13 = vsyncpa [#allocation7], 0
    %14 = vsyncpa [#allocation5], 0
    %s15 = scalar_lea.sflag [#allocation5], 1
    %16 = vsyncpa %s15, 0
    %17 = vsyncpa [#allocation10], 0
    %s18 = scalar_lea.sflag [#allocation10], 1
    %19 = vsyncpa %s18, 0
    loop: start=0, step=1, limit=4
    $region2: #{tpu_custom_call.1} parent=1 // loop_pre_header
      _
    $region3: #{tpu_custom_call.1} parent=1 // loop_header
      %s21 = sphi 0, %s25
      %p22 = scmp.ge.s32.totalorder %s21, 4
      %s28 = sphi 0, %s47
      %s29 = sphi 0, %s43
      %s30 = sphi 0, %s39
      %s31 = sphi 0, %s28
      %s32 = sphi 0, %s29
      %s33 = sphi 0, %s30
      %s34 = sphi 0, %s31
      %s35 = sphi 0, %s32
      %s36 = sphi 0, %s33
      %s52 = sphi 0, %s54
      %s55 = sphi 0, %s52
      %s56 = sphi 0, %s55
      %s72 = sphi 0, %s56
      %s78 = sphi 0, %s80
      %s81 = sphi 0, %s78
      %s82 = sphi 0, %s81
      %s98 = sphi 0, %s82
      %s108 = sphi 0, %s110
      %s111 = sphi 0, %s108
      %s112 = sphi 0, %s111
      %s128 = sphi 0, %s112
      %s138 = sphi 0, %s140
      %s141 = sphi 0, %s138
      %s142 = sphi 0, %s141
      %s158 = sphi 0, %s142
      %s168 = sphi 0, %s170
      %s171 = sphi 0, %s168
      %s172 = sphi 0, %s171
      %s188 = sphi 0, %s172
    $region4: #{tpu_custom_call.1} parent=1 // loop_header_branch
      %24 = sbr.rel (%p22) target = $region8
    $region5: #{tpu_custom_call.1} parent=1 // loop_body
      %s26 = ssub.s32 %s21, 1
      %s27 = ssub.s32 %s21, 2
      %s37 = sadd.s32 1, %s30
      %p38 = scmp.ge.s32.totalorder %s37, 1
      %s39 = scalar_select %p38, 0, %s37
      %s40 = sadd.s32 1, %s29
      %s41 = scalar_select %p38, %s40, %s29
      %p42 = scmp.ge.s32.totalorder %s41, 1
      %s43 = scalar_select %p42, 0, %s41
      %s44 = sadd.s32 1, %s28
      %s45 = scalar_select %p42, %s44, %s28
      %p46 = scmp.ge.s32.totalorder %s45, 2
      %s47 = scalar_select %p46, 0, %s45
      %s48 = ssub.s32 %s29, %s43
      %s49 = ssub.s32 %s28, %s47
      %s50 = sor.u32 %s48, %s49
      %p51 = scmp.eq.s32.totalorder %s50, 0
      %s53 = sadd.s32 %s52, 1
      %s54 = scalar_select %p51, %s52, %s53
      %p57 = pneg %p51
      %p58 = scmp.eq.s32.totalorder %s21, 1
      %p59 = por %p57, %p58
      %p60 = scmp.ne.s32.totalorder %s52, %s55
      %p61 = scmp.eq.s32.totalorder %s21, 0
      %p62 = por %p60, %p61
      %p63 = scmp.ne.s32.totalorder %s52, %s55
      %p64 = scmp.eq.s32.totalorder %s26, 1
      %p65 = por %p63, %p64
      %p66 = scmp.ne.s32.totalorder %s55, %s56
      %p67 = scmp.eq.s32.totalorder %s26, 0
      %p68 = por %p66, %p67
      %p69 = scmp.ne.s32.totalorder %s55, %s56
      %p70 = scmp.eq.s32.totalorder %s27, 1
      %p71 = por %p69, %p70
      %p73 = scmp.ne.s32.totalorder %s56, %s72
      %p74 = scmp.eq.s32.totalorder %s27, 0
      %p75 = por %p73, %p74
      %s76 = ssub.s32 %s30, %s39
      %p77 = scmp.eq.s32.totalorder %s76, 0
      %s79 = sadd.s32 %s78, 1
      %s80 = scalar_select %p77, %s78, %s79
      %p83 = pneg %p77
      %p84 = scmp.eq.s32.totalorder %s21, 1
      %p85 = por %p83, %p84
      %p86 = scmp.ne.s32.totalorder %s78, %s81
      %p87 = scmp.eq.s32.totalorder %s21, 0
      %p88 = por %p86, %p87
      %p89 = scmp.ne.s32.totalorder %s78, %s81
      %p90 = scmp.eq.s32.totalorder %s26, 1
      %p91 = por %p89, %p90
      %p92 = scmp.ne.s32.totalorder %s81, %s82
      %p93 = scmp.eq.s32.totalorder %s26, 0
      %p94 = por %p92, %p93
      %p95 = scmp.ne.s32.totalorder %s81, %s82
      %p96 = scmp.eq.s32.totalorder %s27, 1
      %p97 = por %p95, %p96
      %p99 = scmp.ne.s32.totalorder %s82, %s98
      %p100 = scmp.eq.s32.totalorder %s27, 0
      %p101 = por %p99, %p100
      %s102 = ssub.s32 %s28, %s47
      %s103 = ssub.s32 %s29, %s43
      %s104 = sor.u32 %s102, %s103
      %s105 = ssub.s32 %s30, %s39
      %s106 = sor.u32 %s104, %s105
      %p107 = scmp.eq.s32.totalorder %s106, 0
      %s109 = sadd.s32 %s108, 1
      %s110 = scalar_select %p107, %s108, %s109
      %p113 = pneg %p107
      %p114 = scmp.eq.s32.totalorder %s21, 1
      %p115 = por %p113, %p114
      %p116 = scmp.ne.s32.totalorder %s108, %s111
      %p117 = scmp.eq.s32.totalorder %s21, 0
      %p118 = por %p116, %p117
      %p119 = scmp.ne.s32.totalorder %s108, %s111
      %p120 = scmp.eq.s32.totalorder %s26, 1
      %p121 = por %p119, %p120
      %p122 = scmp.ne.s32.totalorder %s111, %s112
      %p123 = scmp.eq.s32.totalorder %s26, 0
      %p124 = por %p122, %p123
      %p125 = scmp.ne.s32.totalorder %s111, %s112
      %p126 = scmp.eq.s32.totalorder %s27, 1
      %p127 = por %p125, %p126
      %p129 = scmp.ne.s32.totalorder %s112, %s128
      %p130 = scmp.eq.s32.totalorder %s27, 0
      %p131 = por %p129, %p130
      %s132 = ssub.s32 %s28, %s47
      %s133 = ssub.s32 %s29, %s43
      %s134 = sor.u32 %s132, %s133
      %s135 = ssub.s32 %s30, %s39
      %s136 = sor.u32 %s134, %s135
      %p137 = scmp.eq.s32.totalorder %s136, 0
      %s139 = sadd.s32 %s138, 1
      %s140 = scalar_select %p137, %s138, %s139
      %p143 = pneg %p137
      %p144 = scmp.eq.s32.totalorder %s21, 1
      %p145 = por %p143, %p144
      %p146 = scmp.ne.s32.totalorder %s138, %s141
      %p147 = scmp.eq.s32.totalorder %s21, 0
      %p148 = por %p146, %p147
      %p149 = scmp.ne.s32.totalorder %s138, %s141
      %p150 = scmp.eq.s32.totalorder %s26, 1
      %p151 = por %p149, %p150
      %p152 = scmp.ne.s32.totalorder %s141, %s142
      %p153 = scmp.eq.s32.totalorder %s26, 0
      %p154 = por %p152, %p153
      %p155 = scmp.ne.s32.totalorder %s141, %s142
      %p156 = scmp.eq.s32.totalorder %s27, 1
      %p157 = por %p155, %p156
      %p159 = scmp.ne.s32.totalorder %s142, %s158
      %p160 = scmp.eq.s32.totalorder %s27, 0
      %p161 = por %p159, %p160
      %s162 = ssub.s32 %s28, %s47
      %s163 = ssub.s32 %s29, %s43
      %s164 = sor.u32 %s162, %s163
      %s165 = ssub.s32 %s30, %s39
      %s166 = sor.u32 %s164, %s165
      %p167 = scmp.eq.s32.totalorder %s166, 0
      %s169 = sadd.s32 %s168, 1
      %s170 = scalar_select %p167, %s168, %s169
      %p173 = pneg %p167
      %p174 = scmp.eq.s32.totalorder %s21, 1
      %p175 = por %p173, %p174
      %p176 = scmp.ne.s32.totalorder %s168, %s171
      %p177 = scmp.eq.s32.totalorder %s21, 0
      %p178 = por %p176, %p177
      %p179 = scmp.ne.s32.totalorder %s168, %s171
      %p180 = scmp.eq.s32.totalorder %s26, 1
      %p181 = por %p179, %p180
      %p182 = scmp.ne.s32.totalorder %s171, %s172
      %p183 = scmp.eq.s32.totalorder %s26, 0
      %p184 = por %p182, %p183
      %p185 = scmp.ne.s32.totalorder %s171, %s172
      %p186 = scmp.eq.s32.totalorder %s27, 1
      %p187 = por %p185, %p186
      %p189 = scmp.ne.s32.totalorder %s172, %s188
      %p190 = scmp.eq.s32.totalorder %s27, 0
      %p191 = por %p189, %p190
      %p192 = scmp.le.s32.totalorder 1, %s21
      %p193 = scmp.lt.s32.totalorder %s21, 3
      %p194 = pnand %p192, %p193
      %p195 = pneg %p194
      // Predicated region
      $region9: #{tpu_custom_call.1} parent=5 // pred_check
        _
      $region10: #{tpu_custom_call.1} parent=5 // pred_check_branch
        %197 = sbr.rel (%p194) target = $region12
      $region11: #{tpu_custom_call.1} parent=5 // pred_region
        %s198 = ssub.s32 %s21, 1
        // Predicated region
        $region13: #{tpu_custom_call.1} parent=11 // pred_check
          %p199 = pneg %p94
        $region14: #{tpu_custom_call.1} parent=11 // pred_check_branch
          %201 = sbr.rel (%p199) target = $region16
        $region15: #{tpu_custom_call.1} parent=11 // pred_region
          %s203 = ssub.s32 384, 384
          %204 = vsyncadd [#allocation7], %s203
          %s205 = smul.addr %s33, 64
          %s206 = scalar_lea.hbm %s1, %s205
          %s207 = sshll.u32 [#allocation6], 4
          %s208 = int_to_ptr.vmem [resolvable:$true] %s207
          %213 = dma.hbm_to_vmem [thread:$0]  %s206, 384, %s208, [#allocation7], 64, 64, 4
        $region16: #{tpu_custom_call.1} parent=11 // pred_fallthru
          _
      $region12: #{tpu_custom_call.1} parent=5 // pred_fallthru
        _
      %p214 = scmp.lt.s32.totalorder %s21, 2
      // Predicated region
      $region17: #{tpu_custom_call.1} parent=5 // pred_check
        %p215 = pneg %p214
      $region18: #{tpu_custom_call.1} parent=5 // pred_check_branch
        %217 = sbr.rel (%p215) target = $region20
      $region19: #{tpu_custom_call.1} parent=5 // pred_region
        // Predicated region
        $region21: #{tpu_custom_call.1} parent=19 // pred_check
          %p218 = pneg %p62
        $region22: #{tpu_custom_call.1} parent=19 // pred_check_branch
          %220 = sbr.rel (%p218) target = $region24
        $region23: #{tpu_custom_call.1} parent=19 // pred_region
          %s221 = sand.u32 %s52, 1
          %s222 = scalar_lea.sflag [#allocation4], %s221
          %s223 = sand.u32 %s52, 1
          %s224 = smul.addr %s223, 144
          %s225 = scalar_lea.vmem [#allocation3], %s224
          %s227 = ssub.s32 2304, 2304
          %228 = vsyncadd %s222, %s227
          %s229 = smul.addr %s28, 36
          %s230 = smul.addr %s29, 72
          %s231 = sadd.s32 %s229, %s230
          %s232 = smul.addr %s231, 64
          %s233 = scalar_lea.hbm %s0, %s232
          %s234 = sshll.u32 %s225, 4
          %s235 = int_to_ptr.vmem [resolvable:$true] %s234
          %240 = dma.hbm_to_vmem [thread:$0]  %s233, 2304, %s235, %s222, 64, 64, 4
        $region24: #{tpu_custom_call.1} parent=19 // pred_fallthru
          _
      $region20: #{tpu_custom_call.1} parent=5 // pred_fallthru
        _
      %p241 = scmp.le.s32.totalorder 1, %s21
      %p242 = scmp.lt.s32.totalorder %s21, 3
      %p243 = pnand %p241, %p242
      %p244 = pneg %p243
      // Predicated region
      $region25: #{tpu_custom_call.1} parent=5 // pred_check
        _
      $region26: #{tpu_custom_call.1} parent=5 // pred_check_branch
        %246 = sbr.rel (%p243) target = $region28
      $region27: #{tpu_custom_call.1} parent=5 // pred_region
        %s247 = ssub.s32 %s21, 1
        %s248 = sand.u32 %s55, 1
        %s249 = scalar_lea.sflag [#allocation4], %s248
        %s250 = sand.u32 %s55, 1
        %s251 = smul.addr %s250, 144
        %s252 = scalar_lea.vmem [#allocation3], %s251
        // Predicated region
        $region29: #{tpu_custom_call.1} parent=27 // pred_check
          %p253 = pneg %p68
        $region30: #{tpu_custom_call.1} parent=27 // pred_check_branch
          %255 = sbr.rel (%p253) target = $region32
        $region31: #{tpu_custom_call.1} parent=27 // pred_region
          %256 = dma.done %s249, 2304
        $region32: #{tpu_custom_call.1} parent=27 // pred_fallthru
          _
        // Predicated region
        $region33: #{tpu_custom_call.1} parent=27 // pred_check
          %p257 = pneg %p94
        $region34: #{tpu_custom_call.1} parent=27 // pred_check_branch
          %259 = sbr.rel (%p257) target = $region36
        $region35: #{tpu_custom_call.1} parent=27 // pred_region
          %260 = dma.done [#allocation7], 384
        $region36: #{tpu_custom_call.1} parent=27 // pred_fallthru
          _
        %s261 = sand.u32 %s55, 1
        %s262 = scalar_lea.sflag [#allocation4], %s261
        %s263 = sand.u32 %s55, 1
        %s264 = smul.addr %s263, 144
        %s265 = scalar_lea.vmem [#allocation3], %s264
        %p266 = pneg %p68
        %p267 = pneg %p65
        %p268 = pneg %p94
        %p269 = pneg %p91
        %p270 = pneg %p124
        %p271 = pneg %p121
        %s272 = sand.u32 %s111, 1
        %s273 = scalar_lea.sflag [#allocation5], %s272
        %s274 = sand.u32 %s111, 1
        %s275 = smul.addr %s274, 128
        %s276 = scalar_lea.vmem [#allocation8], %s275
        %p277 = pneg %p154
        %p278 = pneg %p151
        %s279 = sand.u32 %s26, 1
        %s280 = scalar_lea.sflag [#allocation10], %s279
        %s281 = sand.u32 %s141, 1
        %s282 = scalar_lea.vmem [#allocation9], %s281
        %p283 = pneg %p184
        %p284 = pneg %p181
        %s285 = sand.u32 %s26, 1
        %s286 = scalar_lea.sflag [#allocation10], %s285
        %s287 = sand.u32 %s171, 1
        %s288 = scalar_lea.vmem [#allocation11], %s287
        %s289 = smul.u32 32, %s32
        %v291 = vld [vmem:[%s252] sm:$0xf]
        %v292 = vld [vmem:[%s252 + $0x4] sm:$0xf]
        %v293 = vld [vmem:[%s252 + $0x8] sm:$0xf]
        %v294 = vld [vmem:[%s252 + $0xc] sm:$0xf]
        %v295 = vld [vmem:[%s252 + $0x10] sm:$0xf]
        %v296 = vld [vmem:[%s252 + $0x14] sm:$0xf]
        %v297 = vld [vmem:[%s252 + $0x18] sm:$0xf]
        %v298 = vld [vmem:[%s252 + $0x1c] sm:$0xf]
        %v299 = vld [vmem:[%s252 + $0x20] sm:$0xf]
        %v300 = vld [vmem:[%s252 + $0x24] sm:$0xf]
        %v301 = vld [vmem:[%s252 + $0x28] sm:$0xf]
        %v302 = vld [vmem:[%s252 + $0x2c] sm:$0xf]
        %v303 = vld [vmem:[%s252 + $0x30] sm:$0xf]
        %v304 = vld [vmem:[%s252 + $0x34] sm:$0xf]
        %v305 = vld [vmem:[%s252 + $0x38] sm:$0xf]
        %v306 = vld [vmem:[%s252 + $0x3c] sm:$0xf]
        %v307 = vld [vmem:[%s252 + $0x40] sm:$0xf]
        %v308 = vld [vmem:[%s252 + $0x44] sm:$0xf]
        %v309 = vld [vmem:[%s252 + $0x48] sm:$0xf]
        %v310 = vld [vmem:[%s252 + $0x4c] sm:$0xf]
        %v311 = vld [vmem:[%s252 + $0x50] sm:$0xf]
        %v312 = vld [vmem:[%s252 + $0x54] sm:$0xf]
        %v313 = vld [vmem:[%s252 + $0x58] sm:$0xf]
        %v314 = vld [vmem:[%s252 + $0x5c] sm:$0xf]
        %v315 = vld [vmem:[%s252 + $0x60] sm:$0xf]
        %v316 = vld [vmem:[%s252 + $0x64] sm:$0xf]
        %v317 = vld [vmem:[%s252 + $0x68] sm:$0xf]
        %v318 = vld [vmem:[%s252 + $0x6c] sm:$0xf]
        %v319 = vld [vmem:[%s252 + $0x70] sm:$0xf]
        %v320 = vld [vmem:[%s252 + $0x74] sm:$0xf]
        %v321 = vld [vmem:[%s252 + $0x78] sm:$0xf]
        %v322 = vld [vmem:[%s252 + $0x7c] sm:$0xf]
        %v323 = vld [vmem:[#allocation6] sm:$0xf]
        %v324 = vld [vmem:[#allocation6 + $0x4] sm:$0x1]
        %v357 = vunpack.c.l.b16 %v291
        %v358 = vunpack.c.l.b16 %v292
        %v359 = vunpack.c.l.b16 %v293
        %v360 = vunpack.c.l.b16 %v294
        %v361 = vunpack.c.l.b16 %v295
        %v362 = vunpack.c.l.b16 %v296
        %v363 = vunpack.c.l.b16 %v297
        %v364 = vunpack.c.l.b16 %v298
        %v365 = vunpack.c.l.b16 %v299
        %v366 = vunpack.c.l.b16 %v300
        %v367 = vunpack.c.l.b16 %v301
        %v368 = vunpack.c.l.b16 %v302
        %v369 = vunpack.c.l.b16 %v303
        %v370 = vunpack.c.l.b16 %v304
        %v371 = vunpack.c.l.b16 %v305
        %v372 = vunpack.c.l.b16 %v306
        %v373 = vunpack.c.l.b16 %v307
        %v374 = vunpack.c.l.b16 %v308
        %v375 = vunpack.c.l.b16 %v309
        %v376 = vunpack.c.l.b16 %v310
        %v377 = vunpack.c.l.b16 %v311
        %v378 = vunpack.c.l.b16 %v312
        %v379 = vunpack.c.l.b16 %v313
        %v380 = vunpack.c.l.b16 %v314
        %v381 = vunpack.c.l.b16 %v315
        %v382 = vunpack.c.l.b16 %v316
        %v383 = vunpack.c.l.b16 %v317
        %v384 = vunpack.c.l.b16 %v318
        %v385 = vunpack.c.l.b16 %v319
        %v386 = vunpack.c.l.b16 %v320
        %v387 = vunpack.c.l.b16 %v321
        %v388 = vunpack.c.l.b16 %v322
        %v389 = vpack.c.b16 %v358, %v357
        %v390 = vpack.c.b16 %v360, %v359
        %v391 = vpack.c.b16 %v362, %v361
        %v392 = vpack.c.b16 %v364, %v363
        %v393 = vpack.c.b16 %v366, %v365
        %v394 = vpack.c.b16 %v368, %v367
        %v395 = vpack.c.b16 %v370, %v369
        %v396 = vpack.c.b16 %v372, %v371
        %v397 = vpack.c.b16 %v374, %v373
        %v398 = vpack.c.b16 %v376, %v375
        %v399 = vpack.c.b16 %v378, %v377
        %v400 = vpack.c.b16 %v380, %v379
        %v401 = vpack.c.b16 %v382, %v381
        %v402 = vpack.c.b16 %v384, %v383
        %v403 = vpack.c.b16 %v386, %v385
        %v404 = vpack.c.b16 %v388, %v387
        %v407 = vunpack.c.l.b16 %v323
        %v408 = vunpack.c.l.b16 %v324
        %v409 = vpack.c.b16 %v408, %v407
        %vm410 = vcmask 72704
        %v412 = vsel %vm410, %v389, 0
        %v415 = vsel %vm410, %v390, 0
        %v418 = vsel %vm410, %v391, 0
        %v421 = vsel %vm410, %v392, 0
        %v424 = vsel %vm410, %v393, 0
        %v427 = vsel %vm410, %v394, 0
        %v430 = vsel %vm410, %v395, 0
        %v433 = vsel %vm410, %v396, 0
        %v436 = vsel %vm410, %v397, 0
        %v439 = vsel %vm410, %v398, 0
        %v442 = vsel %vm410, %v399, 0
        %v445 = vsel %vm410, %v400, 0
        %v448 = vsel %vm410, %v401, 0
        %v451 = vsel %vm410, %v402, 0
        %v454 = vsel %vm410, %v403, 0
        %v457 = vsel %vm410, %v404, 0
        %vm459 = vcmask 1043456
        %vm460 = vcmask 1044480
        %v461 = vsel %vm459, 4294967295, 65535
        %v462 = vsel %vm460, %v461, 0
        %v464 = vand.u32 %v409, %v462
        %466 = vmatprep.subr.bf16.mxu0 0
        %467 = vmatpush1.bf16.msra.mxu0 %v464
        %468 = vmatprep.subr.bf16.mxu0 0
        %469 = vmatpush1.bf16.msra.mxu0 0
        %470 = vmatprep.subr.bf16.mxu0 0
        %471 = vmatpush1.bf16.msra.mxu0 0
        %472 = vmatprep.subr.bf16.mxu0 0
        %473 = vmatpush1.bf16.msra.mxu0 0
        %474 = vmatprep.subr.bf16.mxu0 0
        %475 = vmatpush1.bf16.msra.mxu0 0
        %476 = vmatprep.subr.bf16.mxu0 0
        %477 = vmatpush1.bf16.msra.mxu0 0
        %478 = vmatprep.subr.bf16.mxu0 0
        %479 = vmatpush1.bf16.msra.mxu0 0
        %480 = vmatprep.subr.bf16.mxu0 0
        %481 = vmatpush1.bf16.msra.mxu0 0
        %482 = vmatprep.subr.bf16.mxu0 0
        %483 = vmatpush1.bf16.msra.mxu0 0
        %484 = vmatprep.subr.bf16.mxu0 0
        %485 = vmatpush1.bf16.msra.mxu0 0
        %486 = vmatprep.subr.bf16.mxu0 0
        %487 = vmatpush1.bf16.msra.mxu0 0
        %488 = vmatprep.subr.bf16.mxu0 0
        %489 = vmatpush1.bf16.msra.mxu0 0
        %490 = vmatprep.subr.bf16.mxu0 0
        %491 = vmatpush1.bf16.msra.mxu0 0
        %492 = vmatprep.subr.bf16.mxu0 0
        %493 = vmatpush1.bf16.msra.mxu0 0
        %494 = vmatprep.subr.bf16.mxu0 0
        %495 = vmatpush1.bf16.msra.mxu0 0
        %496 = vmatprep.subr.bf16.mxu0 0
        %497 = vmatpush1.bf16.msra.mxu0 0
        %498 = vmatprep.mubr.bf16.mxu0 0
        %499 = vmatmul.mubr.bf16.gmra.mrb[0].mxu0 %v412
        %v500 = vpop.f32.mrb[0].mxu0
        %v501 = vadd.f32 0.0, %v500
        %v502 = vpop.f32.mrb[0].mxu0
        %v503 = vpop.f32.mrb[0].mxu0
        %v504 = vadd.f32 0.0, %v503
        %v505 = vpop.f32.mrb[0].mxu0
        %506 = vmatprep.mubr.bf16.mxu0 0
        %507 = vmatmul.mubr.bf16.gmra.mrb[0].mxu0 %v415
        %v508 = vpop.f32.mrb[0].mxu0
        %v509 = vadd.f32 0.0, %v508
        %v510 = vpop.f32.mrb[0].mxu0
        %v511 = vpop.f32.mrb[0].mxu0
        %v512 = vadd.f32 0.0, %v511
        %v513 = vpop.f32.mrb[0].mxu0
        %514 = vmatprep.mubr.bf16.mxu0 0
        %515 = vmatmul.mubr.bf16.gmra.mrb[0].mxu0 %v418
        %v516 = vpop.f32.mrb[0].mxu0
        %v517 = vadd.f32 0.0, %v516
        %v518 = vpop.f32.mrb[0].mxu0
        %v519 = vpop.f32.mrb[0].mxu0
        %v520 = vadd.f32 0.0, %v519
        %v521 = vpop.f32.mrb[0].mxu0
        %522 = vmatprep.mubr.bf16.mxu0 0
        %523 = vmatmul.mubr.bf16.gmra.mrb[0].mxu0 %v421
        %v524 = vpop.f32.mrb[0].mxu0
        %v525 = vadd.f32 0.0, %v524
        %v526 = vpop.f32.mrb[0].mxu0
        %v527 = vpop.f32.mrb[0].mxu0
        %v528 = vadd.f32 0.0, %v527
        %v529 = vpop.f32.mrb[0].mxu0
        %530 = vmatprep.mubr.bf16.mxu0 0
        %531 = vmatmul.mubr.bf16.gmra.mrb[0].mxu0 %v424
        %v532 = vpop.f32.mrb[0].mxu0
        %v533 = vadd.f32 0.0, %v532
        %v534 = vpop.f32.mrb[0].mxu0
        %v535 = vpop.f32.mrb[0].mxu0
        %v536 = vadd.f32 0.0, %v535
        %v537 = vpop.f32.mrb[0].mxu0
        %538 = vmatprep.mubr.bf16.mxu0 0
        %539 = vmatmul.mubr.bf16.gmra.mrb[0].mxu0 %v427
        %v540 = vpop.f32.mrb[0].mxu0
        %v541 = vadd.f32 0.0, %v540
        %v542 = vpop.f32.mrb[0].mxu0
        %v543 = vpop.f32.mrb[0].mxu0
        %v544 = vadd.f32 0.0, %v543
        %v545 = vpop.f32.mrb[0].mxu0
        %546 = vmatprep.mubr.bf16.mxu0 0
        %547 = vmatmul.mubr.bf16.gmra.mrb[0].mxu0 %v430
        %v548 = vpop.f32.mrb[0].mxu0
        %v549 = vadd.f32 0.0, %v548
        %v550 = vpop.f32.mrb[0].mxu0
        %v551 = vpop.f32.mrb[0].mxu0
        %v552 = vadd.f32 0.0, %v551
        %v553 = vpop.f32.mrb[0].mxu0
        %554 = vmatprep.mubr.bf16.mxu0 0
        %555 = vmatmul.mubr.bf16.gmra.mrb[0].mxu0 %v433
        %v556 = vpop.f32.mrb[0].mxu0
        %v557 = vadd.f32 0.0, %v556
        %v558 = vpop.f32.mrb[0].mxu0
        %v559 = vpop.f32.mrb[0].mxu0
        %v560 = vadd.f32 0.0, %v559
        %v561 = vpop.f32.mrb[0].mxu0
        %562 = vmatprep.mubr.bf16.mxu0 0
        %563 = vmatmul.mubr.bf16.gmra.mrb[0].mxu0 %v436
        %v564 = vpop.f32.mrb[0].mxu0
        %v565 = vadd.f32 0.0, %v564
        %v566 = vpop.f32.mrb[0].mxu0
        %v567 = vpop.f32.mrb[0].mxu0
        %v568 = vadd.f32 0.0, %v567
        %v569 = vpop.f32.mrb[0].mxu0
        %570 = vmatprep.mubr.bf16.mxu0 0
        %571 = vmatmul.mubr.bf16.gmra.mrb[0].mxu0 %v439
        %v572 = vpop.f32.mrb[0].mxu0
        %v573 = vadd.f32 0.0, %v572
        %v574 = vpop.f32.mrb[0].mxu0
        %v575 = vpop.f32.mrb[0].mxu0
        %v576 = vadd.f32 0.0, %v575
        %v577 = vpop.f32.mrb[0].mxu0
        %578 = vmatprep.mubr.bf16.mxu0 0
        %579 = vmatmul.mubr.bf16.gmra.mrb[0].mxu0 %v442
        %v580 = vpop.f32.mrb[0].mxu0
        %v581 = vadd.f32 0.0, %v580
        %v582 = vpop.f32.mrb[0].mxu0
        %v583 = vpop.f32.mrb[0].mxu0
        %v584 = vadd.f32 0.0, %v583
        %v585 = vpop.f32.mrb[0].mxu0
        %586 = vmatprep.mubr.bf16.mxu0 0
        %587 = vmatmul.mubr.bf16.gmra.mrb[0].mxu0 %v445
        %v588 = vpop.f32.mrb[0].mxu0
        %v589 = vadd.f32 0.0, %v588
        %v590 = vpop.f32.mrb[0].mxu0
        %v591 = vpop.f32.mrb[0].mxu0
        %v592 = vadd.f32 0.0, %v591
        %v593 = vpop.f32.mrb[0].mxu0
        %594 = vmatprep.mubr.bf16.mxu0 0
        %595 = vmatmul.mubr.bf16.gmra.mrb[0].mxu0 %v448
        %v596 = vpop.f32.mrb[0].mxu0
        %v597 = vadd.f32 0.0, %v596
        %v598 = vpop.f32.mrb[0].mxu0
        %v599 = vpop.f32.mrb[0].mxu0
        %v600 = vadd.f32 0.0, %v599
        %v601 = vpop.f32.mrb[0].mxu0
        %602 = vmatprep.mubr.bf16.mxu0 0
        %603 = vmatmul.mubr.bf16.gmra.mrb[0].mxu0 %v451
        %v604 = vpop.f32.mrb[0].mxu0
        %v605 = vadd.f32 0.0, %v604
        %v606 = vpop.f32.mrb[0].mxu0
        %v607 = vpop.f32.mrb[0].mxu0
        %v608 = vadd.f32 0.0, %v607
        %v609 = vpop.f32.mrb[0].mxu0
        %610 = vmatprep.mubr.bf16.mxu0 0
        %611 = vmatmul.mubr.bf16.gmra.mrb[0].mxu0 %v454
        %v612 = vpop.f32.mrb[0].mxu0
        %v613 = vadd.f32 0.0, %v612
        %v614 = vpop.f32.mrb[0].mxu0
        %v615 = vpop.f32.mrb[0].mxu0
        %v616 = vadd.f32 0.0, %v615
        %v617 = vpop.f32.mrb[0].mxu0
        %618 = vmatprep.mubr.bf16.mxu0 0
        %619 = vmatmul.mubr.bf16.gmra.mrb[0].mxu0 %v457
        %v620 = vpop.f32.mrb[0].mxu0
        %v621 = vadd.f32 0.0, %v620
        %v622 = vpop.f32.mrb[0].mxu0
        %v623 = vpop.f32.mrb[0].mxu0
        %v624 = vadd.f32 0.0, %v623
        %v625 = vpop.f32.mrb[0].mxu0
        %626 = vdwg.mxu0
        %vm627 = vcmask 523264
        %628 = vst.msk [vmem:[#allocation2] sm:$0xff] %vm627, %v501
        %629 = vst.msk [vmem:[#allocation2 + $0x8] sm:$0xff] %vm627, %v504
        %630 = vst.msk [vmem:[#allocation2 + $0x10] sm:$0xff] %vm627, %v509
        %631 = vst.msk [vmem:[#allocation2 + $0x18] sm:$0xff] %vm627, %v512
        %632 = vst.msk [vmem:[#allocation2 + $0x20] sm:$0xff] %vm627, %v517
        %633 = vst.msk [vmem:[#allocation2 + $0x28] sm:$0xff] %vm627, %v520
        %634 = vst.msk [vmem:[#allocation2 + $0x30] sm:$0xff] %vm627, %v525
        %635 = vst.msk [vmem:[#allocation2 + $0x38] sm:$0xff] %vm627, %v528
        %636 = vst.msk [vmem:[#allocation2 + $0x40] sm:$0xff] %vm627, %v533
        %637 = vst.msk [vmem:[#allocation2 + $0x48] sm:$0xff] %vm627, %v536
        %638 = vst.msk [vmem:[#allocation2 + $0x50] sm:$0xff] %vm627, %v541
        %639 = vst.msk [vmem:[#allocation2 + $0x58] sm:$0xff] %vm627, %v544
        %640 = vst.msk [vmem:[#allocation2 + $0x60] sm:$0xff] %vm627, %v549
        %641 = vst.msk [vmem:[#allocation2 + $0x68] sm:$0xff] %vm627, %v552
        %642 = vst.msk [vmem:[#allocation2 + $0x70] sm:$0xff] %vm627, %v557
        %643 = vst.msk [vmem:[#allocation2 + $0x78] sm:$0xff] %vm627, %v560
        %644 = vst.msk [vmem:[#allocation2 + $0x80] sm:$0xff] %vm627, %v565
        %645 = vst.msk [vmem:[#allocation2 + $0x88] sm:$0xff] %vm627, %v568
        %646 = vst.msk [vmem:[#allocation2 + $0x90] sm:$0xff] %vm627, %v573
        %647 = vst.msk [vmem:[#allocation2 + $0x98] sm:$0xff] %vm627, %v576
        %648 = vst.msk [vmem:[#allocation2 + $0xa0] sm:$0xff] %vm627, %v581
        %649 = vst.msk [vmem:[#allocation2 + $0xa8] sm:$0xff] %vm627, %v584
        %650 = vst.msk [vmem:[#allocation2 + $0xb0] sm:$0xff] %vm627, %v589
        %651 = vst.msk [vmem:[#allocation2 + $0xb8] sm:$0xff] %vm627, %v592
        %652 = vst.msk [vmem:[#allocation2 + $0xc0] sm:$0xff] %vm627, %v597
        %653 = vst.msk [vmem:[#allocation2 + $0xc8] sm:$0xff] %vm627, %v600
        %654 = vst.msk [vmem:[#allocation2 + $0xd0] sm:$0xff] %vm627, %v605
        %655 = vst.msk [vmem:[#allocation2 + $0xd8] sm:$0xff] %vm627, %v608
        %656 = vst.msk [vmem:[#allocation2 + $0xe0] sm:$0xff] %vm627, %v613
        %657 = vst.msk [vmem:[#allocation2 + $0xe8] sm:$0xff] %vm627, %v616
        %658 = vst.msk [vmem:[#allocation2 + $0xf0] sm:$0xff] %vm627, %v621
        %659 = vst.msk [vmem:[#allocation2 + $0xf8] sm:$0xff] %vm627, %v624
        %v660 = vld [vmem:[%s252 + $0x8] sm:$0xf]
        %v661 = vld [vmem:[%s252 + $0xc] sm:$0xf]
        %v662 = vld [vmem:[%s252 + $0x10] sm:$0xf]
        %v663 = vld [vmem:[%s252 + $0x14] sm:$0xf]
        %v664 = vld [vmem:[%s252 + $0x18] sm:$0xf]
        %v665 = vld [vmem:[%s252 + $0x1c] sm:$0xf]
        %v666 = vld [vmem:[%s252 + $0x20] sm:$0xf]
        %v667 = vld [vmem:[%s252 + $0x24] sm:$0xf]
        %v668 = vld [vmem:[%s252 + $0x28] sm:$0xf]
        %v669 = vld [vmem:[%s252 + $0x2c] sm:$0xf]
        %v670 = vld [vmem:[%s252 + $0x30] sm:$0xf]
        %v671 = vld [vmem:[%s252 + $0x34] sm:$0xf]
        %v672 = vld [vmem:[%s252 + $0x38] sm:$0xf]
        %v673 = vld [vmem:[%s252 + $0x3c] sm:$0xf]
        %v674 = vld [vmem:[%s252 + $0x40] sm:$0xf]
        %v675 = vld [vmem:[%s252 + $0x44] sm:$0xf]
        %v676 = vld [vmem:[%s252 + $0x48] sm:$0xf]
        %v677 = vld [vmem:[%s252 + $0x4c] sm:$0xf]
        %v678 = vld [vmem:[%s252 + $0x50] sm:$0xf]
        %v679 = vld [vmem:[%s252 + $0x54] sm:$0xf]
        %v680 = vld [vmem:[%s252 + $0x58] sm:$0xf]
        %v681 = vld [vmem:[%s252 + $0x5c] sm:$0xf]
        %v682 = vld [vmem:[%s252 + $0x60] sm:$0xf]
        %v683 = vld [vmem:[%s252 + $0x64] sm:$0xf]
        %v684 = vld [vmem:[%s252 + $0x68] sm:$0xf]
        %v685 = vld [vmem:[%s252 + $0x6c] sm:$0xf]
        %v686 = vld [vmem:[%s252 + $0x70] sm:$0xf]
        %v687 = vld [vmem:[%s252 + $0x74] sm:$0xf]
        %v688 = vld [vmem:[%s252 + $0x78] sm:$0xf]
        %v689 = vld [vmem:[%s252 + $0x7c] sm:$0xf]
        %v690 = vld [vmem:[%s252 + $0x80] sm:$0xf]
        %v691 = vld [vmem:[%s252 + $0x84] sm:$0xf]
        %s692 = scalar_lea.vmem [#allocation6], 8
        %v693 = vld [vmem:[%s692] sm:$0xf]
        %v694 = vld [vmem:[%s692 + $0x4] sm:$0x1]
        %v727 = vunpack.c.l.b16 %v660
        %v728 = vunpack.c.l.b16 %v661
        %v729 = vunpack.c.l.b16 %v662
        %v730 = vunpack.c.l.b16 %v663
        %v731 = vunpack.c.l.b16 %v664
        %v732 = vunpack.c.l.b16 %v665
        %v733 = vunpack.c.l.b16 %v666
        %v734 = vunpack.c.l.b16 %v667
        %v735 = vunpack.c.l.b16 %v668
        %v736 = vunpack.c.l.b16 %v669
        %v737 = vunpack.c.l.b16 %v670
        %v738 = vunpack.c.l.b16 %v671
        %v739 = vunpack.c.l.b16 %v672
        %v740 = vunpack.c.l.b16 %v673
        %v741 = vunpack.c.l.b16 %v674
        %v742 = vunpack.c.l.b16 %v675
        %v743 = vunpack.c.l.b16 %v676
        %v744 = vunpack.c.l.b16 %v677
        %v745 = vunpack.c.l.b16 %v678
        %v746 = vunpack.c.l.b16 %v679
        %v747 = vunpack.c.l.b16 %v680
        %v748 = vunpack.c.l.b16 %v681
        %v749 = vunpack.c.l.b16 %v682
        %v750 = vunpack.c.l.b16 %v683
        %v751 = vunpack.c.l.b16 %v684
        %v752 = vunpack.c.l.b16 %v685
        %v753 = vunpack.c.l.b16 %v686
        %v754 = vunpack.c.l.b16 %v687
        %v755 = vunpack.c.l.b16 %v688
        %v756 = vunpack.c.l.b16 %v689
        %v757 = vunpack.c.l.b16 %v690
        %v758 = vunpack.c.l.b16 %v691
        %v759 = vpack.c.b16 %v728, %v727
        %v760 = vpack.c.b16 %v730, %v729
        %v761 = vpack.c.b16 %v732, %v731
        %v762 = vpack.c.b16 %v734, %v733
        %v763 = vpack.c.b16 %v736, %v735
        %v764 = vpack.c.b16 %v738, %v737
        %v765 = vpack.c.b16 %v740, %v739
        %v766 = vpack.c.b16 %v742, %v741
        %v767 = vpack.c.b16 %v744, %v743
        %v768 = vpack.c.b16 %v746, %v745
        %v769 = vpack.c.b16 %v748, %v747
        %v770 = vpack.c.b16 %v750, %v749
        %v771 = vpack.c.b16 %v752, %v751
        %v772 = vpack.c.b16 %v754, %v753
        %v773 = vpack.c.b16 %v756, %v755
        %v774 = vpack.c.b16 %v758, %v757
        %v777 = vunpack.c.l.b16 %v693
        %v778 = vunpack.c.l.b16 %v694
        %v779 = vpack.c.b16 %v778, %v777
        %v781 = vsel %vm410, %v759, 0
        %v784 = vsel %vm410, %v760, 0
        %v787 = vsel %vm410, %v761, 0
        %v790 = vsel %vm410, %v762, 0
        %v793 = vsel %vm410, %v763, 0
        %v796 = vsel %vm410, %v764, 0
        %v799 = vsel %vm410, %v765, 0
        %v802 = vsel %vm410, %v766, 0
        %v805 = vsel %vm410, %v767, 0
        %v808 = vsel %vm410, %v768, 0
        %v811 = vsel %vm410, %v769, 0
        %v814 = vsel %vm410, %v770, 0
        %v817 = vsel %vm410, %v771, 0
        %v820 = vsel %vm410, %v772, 0
        %v823 = vsel %vm410, %v773, 0
        %v826 = vsel %vm410, %v774, 0
        %v829 = vand.u32 %v779, %v462
        %831 = vmatprep.subr.bf16.mxu0 0
        %832 = vmatpush1.bf16.msra.mxu0 %v829
        %833 = vmatprep.subr.bf16.mxu0 0
        %834 = vmatpush1.bf16.msra.mxu0 0
        %835 = vmatprep.subr.bf16.mxu0 0
        %836 = vmatpush1.bf16.msra.mxu0 0
        %837 = vmatprep.subr.bf16.mxu0 0
        %838 = vmatpush1.bf16.msra.mxu0 0
        %839 = vmatprep.subr.bf16.mxu0 0
        %840 = vmatpush1.bf16.msra.mxu0 0
        %841 = vmatprep.subr.bf16.mxu0 0
        %842 = vmatpush1.bf16.msra.mxu0 0
        %843 = vmatprep.subr.bf16.mxu0 0
        %844 = vmatpush1.bf16.msra.mxu0 0
        %845 = vmatprep.subr.bf16.mxu0 0
        %846 = vmatpush1.bf16.msra.mxu0 0
        %847 = vmatprep.subr.bf16.mxu0 0
        %848 = vmatpush1.bf16.msra.mxu0 0
        %849 = vmatprep.subr.bf16.mxu0 0
        %850 = vmatpush1.bf16.msra.mxu0 0
        %851 = vmatprep.subr.bf16.mxu0 0
        %852 = vmatpush1.bf16.msra.mxu0 0
        %853 = vmatprep.subr.bf16.mxu0 0
        %854 = vmatpush1.bf16.msra.mxu0 0
        %855 = vmatprep.subr.bf16.mxu0 0
        %856 = vmatpush1.bf16.msra.mxu0 0
        %857 = vmatprep.subr.bf16.mxu0 0
        %858 = vmatpush1.bf16.msra.mxu0 0
        %859 = vmatprep.subr.bf16.mxu0 0
        %860 = vmatpush1.bf16.msra.mxu0 0
        %861 = vmatprep.subr.bf16.mxu0 0
        %862 = vmatpush1.bf16.msra.mxu0 0
        %863 = vmatprep.mubr.bf16.mxu0 0
        %864 = vmatmul.mubr.bf16.gmra.mrb[0].mxu0 %v781
        %v865 = vpop.f32.mrb[0].mxu0
        %v866 = vadd.f32 0.0, %v865
        %v867 = vpop.f32.mrb[0].mxu0
        %v868 = vpop.f32.mrb[0].mxu0
        %v869 = vadd.f32 0.0, %v868
        %v870 = vpop.f32.mrb[0].mxu0
        %871 = vmatprep.mubr.bf16.mxu0 0
        %872 = vmatmul.mubr.bf16.gmra.mrb[0].mxu0 %v784
        %v873 = vpop.f32.mrb[0].mxu0
        %v874 = vadd.f32 0.0, %v873
        %v875 = vpop.f32.mrb[0].mxu0
        %v876 = vpop.f32.mrb[0].mxu0
        %v877 = vadd.f32 0.0, %v876
        %v878 = vpop.f32.mrb[0].mxu0
        %879 = vmatprep.mubr.bf16.mxu0 0
        %880 = vmatmul.mubr.bf16.gmra.mrb[0].mxu0 %v787
        %v881 = vpop.f32.mrb[0].mxu0
        %v882 = vadd.f32 0.0, %v881
        %v883 = vpop.f32.mrb[0].mxu0
        %v884 = vpop.f32.mrb[0].mxu0
        %v885 = vadd.f32 0.0, %v884
        %v886 = vpop.f32.mrb[0].mxu0
        %887 = vmatprep.mubr.bf16.mxu0 0
        %888 = vmatmul.mubr.bf16.gmra.mrb[0].mxu0 %v790
        %v889 = vpop.f32.mrb[0].mxu0
        %v890 = vadd.f32 0.0, %v889
        %v891 = vpop.f32.mrb[0].mxu0
        %v892 = vpop.f32.mrb[0].mxu0
        %v893 = vadd.f32 0.0, %v892
        %v894 = vpop.f32.mrb[0].mxu0
        %895 = vmatprep.mubr.bf16.mxu0 0
        %896 = vmatmul.mubr.bf16.gmra.mrb[0].mxu0 %v793
        %v897 = vpop.f32.mrb[0].mxu0
        %v898 = vadd.f32 0.0, %v897
        %v899 = vpop.f32.mrb[0].mxu0
        %v900 = vpop.f32.mrb[0].mxu0
        %v901 = vadd.f32 0.0, %v900
        %v902 = vpop.f32.mrb[0].mxu0
        %903 = vmatprep.mubr.bf16.mxu0 0
        %904 = vmatmul.mubr.bf16.gmra.mrb[0].mxu0 %v796
        %v905 = vpop.f32.mrb[0].mxu0
        %v906 = vadd.f32 0.0, %v905
        %v907 = vpop.f32.mrb[0].mxu0
        %v908 = vpop.f32.mrb[0].mxu0
        %v909 = vadd.f32 0.0, %v908
        %v910 = vpop.f32.mrb[0].mxu0
        %911 = vmatprep.mubr.bf16.mxu0 0
        %912 = vmatmul.mubr.bf16.gmra.mrb[0].mxu0 %v799
        %v913 = vpop.f32.mrb[0].mxu0
        %v914 = vadd.f32 0.0, %v913
        %v915 = vpop.f32.mrb[0].mxu0
        %v916 = vpop.f32.mrb[0].mxu0
        %v917 = vadd.f32 0.0, %v916
        %v918 = vpop.f32.mrb[0].mxu0
        %919 = vmatprep.mubr.bf16.mxu0 0
        %920 = vmatmul.mubr.bf16.gmra.mrb[0].mxu0 %v802
        %v921 = vpop.f32.mrb[0].mxu0
        %v922 = vadd.f32 0.0, %v921
        %v923 = vpop.f32.mrb[0].mxu0
        %v924 = vpop.f32.mrb[0].mxu0
        %v925 = vadd.f32 0.0, %v924
        %v926 = vpop.f32.mrb[0].mxu0
        %927 = vmatprep.mubr.bf16.mxu0 0
        %928 = vmatmul.mubr.bf16.gmra.mrb[0].mxu0 %v805
        %v929 = vpop.f32.mrb[0].mxu0
        %v930 = vadd.f32 0.0, %v929
        %v931 = vpop.f32.mrb[0].mxu0
        %v932 = vpop.f32.mrb[0].mxu0
        %v933 = vadd.f32 0.0, %v932
        %v934 = vpop.f32.mrb[0].mxu0
        %935 = vmatprep.mubr.bf16.mxu0 0
        %936 = vmatmul.mubr.bf16.gmra.mrb[0].mxu0 %v808
        %v937 = vpop.f32.mrb[0].mxu0
        %v938 = vadd.f32 0.0, %v937
        %v939 = vpop.f32.mrb[0].mxu0
        %v940 = vpop.f32.mrb[0].mxu0
        %v941 = vadd.f32 0.0, %v940
        %v942 = vpop.f32.mrb[0].mxu0
        %943 = vmatprep.mubr.bf16.mxu0 0
        %944 = vmatmul.mubr.bf16.gmra.mrb[0].mxu0 %v811
        %v945 = vpop.f32.mrb[0].mxu0
        %v946 = vadd.f32 0.0, %v945
        %v947 = vpop.f32.mrb[0].mxu0
        %v948 = vpop.f32.mrb[0].mxu0
        %v949 = vadd.f32 0.0, %v948
        %v950 = vpop.f32.mrb[0].mxu0
        %951 = vmatprep.mubr.bf16.mxu0 0
        %952 = vmatmul.mubr.bf16.gmra.mrb[0].mxu0 %v814
        %v953 = vpop.f32.mrb[0].mxu0
        %v954 = vadd.f32 0.0, %v953
        %v955 = vpop.f32.mrb[0].mxu0
        %v956 = vpop.f32.mrb[0].mxu0
        %v957 = vadd.f32 0.0, %v956
        %v958 = vpop.f32.mrb[0].mxu0
        %959 = vmatprep.mubr.bf16.mxu0 0
        %960 = vmatmul.mubr.bf16.gmra.mrb[0].mxu0 %v817
        %v961 = vpop.f32.mrb[0].mxu0
        %v962 = vadd.f32 0.0, %v961
        %v963 = vpop.f32.mrb[0].mxu0
        %v964 = vpop.f32.mrb[0].mxu0
        %v965 = vadd.f32 0.0, %v964
        %v966 = vpop.f32.mrb[0].mxu0
        %967 = vmatprep.mubr.bf16.mxu0 0
        %968 = vmatmul.mubr.bf16.gmra.mrb[0].mxu0 %v820
        %v969 = vpop.f32.mrb[0].mxu0
        %v970 = vadd.f32 0.0, %v969
        %v971 = vpop.f32.mrb[0].mxu0
        %v972 = vpop.f32.mrb[0].mxu0
        %v973 = vadd.f32 0.0, %v972
        %v974 = vpop.f32.mrb[0].mxu0
        %975 = vmatprep.mubr.bf16.mxu0 0
        %976 = vmatmul.mubr.bf16.gmra.mrb[0].mxu0 %v823
        %v977 = vpop.f32.mrb[0].mxu0
        %v978 = vadd.f32 0.0, %v977
        %v979 = vpop.f32.mrb[0].mxu0
        %v980 = vpop.f32.mrb[0].mxu0
        %v981 = vadd.f32 0.0, %v980
        %v982 = vpop.f32.mrb[0].mxu0
        %983 = vmatprep.mubr.bf16.mxu0 0
        %984 = vmatmul.mubr.bf16.gmra.mrb[0].mxu0 %v826
        %v985 = vpop.f32.mrb[0].mxu0
        %v986 = vadd.f32 0.0, %v985
        %v987 = vpop.f32.mrb[0].mxu0
        %v988 = vpop.f32.mrb[0].mxu0
        %v989 = vadd.f32 0.0, %v988
        %v990 = vpop.f32.mrb[0].mxu0
        %991 = vdwg.mxu0
        %v992 = vld [vmem:[#allocation2] sm:$0xff]
        %v993 = vld [vmem:[#allocation2 + $0x8] sm:$0xff]
        %v994 = vld [vmem:[#allocation2 + $0x10] sm:$0xff]
        %v995 = vld [vmem:[#allocation2 + $0x18] sm:$0xff]
        %v996 = vld [vmem:[#allocation2 + $0x20] sm:$0xff]
        %v997 = vld [vmem:[#allocation2 + $0x28] sm:$0xff]
        %v998 = vld [vmem:[#allocation2 + $0x30] sm:$0xff]
        %v999 = vld [vmem:[#allocation2 + $0x38] sm:$0xff]
        %v1000 = vld [vmem:[#allocation2 + $0x40] sm:$0xff]
        %v1001 = vld [vmem:[#allocation2 + $0x48] sm:$0xff]
        %v1002 = vld [vmem:[#allocation2 + $0x50] sm:$0xff]
        %v1003 = vld [vmem:[#allocation2 + $0x58] sm:$0xff]
        %v1004 = vld [vmem:[#allocation2 + $0x60] sm:$0xff]
        %v1005 = vld [vmem:[#allocation2 + $0x68] sm:$0xff]
        %v1006 = vld [vmem:[#allocation2 + $0x70] sm:$0xff]
        %v1007 = vld [vmem:[#allocation2 + $0x78] sm:$0xff]
        %v1008 = vld [vmem:[#allocation2 + $0x80] sm:$0xff]
        %v1009 = vld [vmem:[#allocation2 + $0x88] sm:$0xff]
        %v1010 = vld [vmem:[#allocation2 + $0x90] sm:$0xff]
        %v1011 = vld [vmem:[#allocation2 + $0x98] sm:$0xff]
        %v1012 = vld [vmem:[#allocation2 + $0xa0] sm:$0xff]
        %v1013 = vld [vmem:[#allocation2 + $0xa8] sm:$0xff]
        %v1014 = vld [vmem:[#allocation2 + $0xb0] sm:$0xff]
        %v1015 = vld [vmem:[#allocation2 + $0xb8] sm:$0xff]
        %v1016 = vld [vmem:[#allocation2 + $0xc0] sm:$0xff]
        %v1017 = vld [vmem:[#allocation2 + $0xc8] sm:$0xff]
        %v1018 = vld [vmem:[#allocation2 + $0xd0] sm:$0xff]
        %v1019 = vld [vmem:[#allocation2 + $0xd8] sm:$0xff]
        %v1020 = vld [vmem:[#allocation2 + $0xe0] sm:$0xff]
        %v1021 = vld [vmem:[#allocation2 + $0xe8] sm:$0xff]
        %v1022 = vld [vmem:[#allocation2 + $0xf0] sm:$0xff]
        %v1023 = vld [vmem:[#allocation2 + $0xf8] sm:$0xff]
        %v1024 = vadd.f32 %v992, %v866
        %v1025 = vadd.f32 %v993, %v869
        %v1026 = vadd.f32 %v994, %v874
        %v1027 = vadd.f32 %v995, %v877
        %v1028 = vadd.f32 %v996, %v882
        %v1029 = vadd.f32 %v997, %v885
        %v1030 = vadd.f32 %v998, %v890
        %v1031 = vadd.f32 %v999, %v893
        %v1032 = vadd.f32 %v1000, %v898
        %v1033 = vadd.f32 %v1001, %v901
        %v1034 = vadd.f32 %v1002, %v906
        %v1035 = vadd.f32 %v1003, %v909
        %v1036 = vadd.f32 %v1004, %v914
        %v1037 = vadd.f32 %v1005, %v917
        %v1038 = vadd.f32 %v1006, %v922
        %v1039 = vadd.f32 %v1007, %v925
        %v1040 = vadd.f32 %v1008, %v930
        %v1041 = vadd.f32 %v1009, %v933
        %v1042 = vadd.f32 %v1010, %v938
        %v1043 = vadd.f32 %v1011, %v941
        %v1044 = vadd.f32 %v1012, %v946
        %v1045 = vadd.f32 %v1013, %v949
        %v1046 = vadd.f32 %v1014, %v954
        %v1047 = vadd.f32 %v1015, %v957
        %v1048 = vadd.f32 %v1016, %v962
        %v1049 = vadd.f32 %v1017, %v965
        %v1050 = vadd.f32 %v1018, %v970
        %v1051 = vadd.f32 %v1019, %v973
        %v1052 = vadd.f32 %v1020, %v978
        %v1053 = vadd.f32 %v1021, %v981
        %v1054 = vadd.f32 %v1022, %v986
        %v1055 = vadd.f32 %v1023, %v989
        %1056 = vst.msk [vmem:[#allocation2] sm:$0xff] %vm627, %v1024
        %1057 = vst.msk [vmem:[#allocation2 + $0x8] sm:$0xff] %vm627, %v1025
        %1058 = vst.msk [vmem:[#allocation2 + $0x10] sm:$0xff] %vm627, %v1026
        %1059 = vst.msk [vmem:[#allocation2 + $0x18] sm:$0xff] %vm627, %v1027
        %1060 = vst.msk [vmem:[#allocation2 + $0x20] sm:$0xff] %vm627, %v1028
        %1061 = vst.msk [vmem:[#allocation2 + $0x28] sm:$0xff] %vm627, %v1029
        %1062 = vst.msk [vmem:[#allocation2 + $0x30] sm:$0xff] %vm627, %v1030
        %1063 = vst.msk [vmem:[#allocation2 + $0x38] sm:$0xff] %vm627, %v1031
        %1064 = vst.msk [vmem:[#allocation2 + $0x40] sm:$0xff] %vm627, %v1032
        %1065 = vst.msk [vmem:[#allocation2 + $0x48] sm:$0xff] %vm627, %v1033
        %1066 = vst.msk [vmem:[#allocation2 + $0x50] sm:$0xff] %vm627, %v1034
        %1067 = vst.msk [vmem:[#allocation2 + $0x58] sm:$0xff] %vm627, %v1035
        %1068 = vst.msk [vmem:[#allocation2 + $0x60] sm:$0xff] %vm627, %v1036
        %1069 = vst.msk [vmem:[#allocation2 + $0x68] sm:$0xff] %vm627, %v1037
        %1070 = vst.msk [vmem:[#allocation2 + $0x70] sm:$0xff] %vm627, %v1038
        %1071 = vst.msk [vmem:[#allocation2 + $0x78] sm:$0xff] %vm627, %v1039
        %1072 = vst.msk [vmem:[#allocation2 + $0x80] sm:$0xff] %vm627, %v1040
        %1073 = vst.msk [vmem:[#allocation2 + $0x88] sm:$0xff] %vm627, %v1041
        %1074 = vst.msk [vmem:[#allocation2 + $0x90] sm:$0xff] %vm627, %v1042
        %1075 = vst.msk [vmem:[#allocation2 + $0x98] sm:$0xff] %vm627, %v1043
        %1076 = vst.msk [vmem:[#allocation2 + $0xa0] sm:$0xff] %vm627, %v1044
        %1077 = vst.msk [vmem:[#allocation2 + $0xa8] sm:$0xff] %vm627, %v1045
        %1078 = vst.msk [vmem:[#allocation2 + $0xb0] sm:$0xff] %vm627, %v1046
        %1079 = vst.msk [vmem:[#allocation2 + $0xb8] sm:$0xff] %vm627, %v1047
        %1080 = vst.msk [vmem:[#allocation2 + $0xc0] sm:$0xff] %vm627, %v1048
        %1081 = vst.msk [vmem:[#allocation2 + $0xc8] sm:$0xff] %vm627, %v1049
        %1082 = vst.msk [vmem:[#allocation2 + $0xd0] sm:$0xff] %vm627, %v1050
        %1083 = vst.msk [vmem:[#allocation2 + $0xd8] sm:$0xff] %vm627, %v1051
        %1084 = vst.msk [vmem:[#allocation2 + $0xe0] sm:$0xff] %vm627, %v1052
        %1085 = vst.msk [vmem:[#allocation2 + $0xe8] sm:$0xff] %vm627, %v1053
        %1086 = vst.msk [vmem:[#allocation2 + $0xf0] sm:$0xff] %vm627, %v1054
        %1087 = vst.msk [vmem:[#allocation2 + $0xf8] sm:$0xff] %vm627, %v1055
        %v1088 = vld [vmem:[%s252 + $0x10] sm:$0xf]
        %v1089 = vld [vmem:[%s252 + $0x14] sm:$0xf]
        %v1090 = vld [vmem:[%s252 + $0x18] sm:$0xf]
        %v1091 = vld [vmem:[%s252 + $0x1c] sm:$0xf]
        %v1092 = vld [vmem:[%s252 + $0x20] sm:$0xf]
        %v1093 = vld [vmem:[%s252 + $0x24] sm:$0xf]
        %v1094 = vld [vmem:[%s252 + $0x28] sm:$0xf]
        %v1095 = vld [vmem:[%s252 + $0x2c] sm:$0xf]
        %v1096 = vld [vmem:[%s252 + $0x30] sm:$0xf]
        %v1097 = vld [vmem:[%s252 + $0x34] sm:$0xf]
        %v1098 = vld [vmem:[%s252 + $0x38] sm:$0xf]
        %v1099 = vld [vmem:[%s252 + $0x3c] sm:$0xf]
        %v1100 = vld [vmem:[%s252 + $0x40] sm:$0xf]
        %v1101 = vld [vmem:[%s252 + $0x44] sm:$0xf]
        %v1102 = vld [vmem:[%s252 + $0x48] sm:$0xf]
        %v1103 = vld [vmem:[%s252 + $0x4c] sm:$0xf]
        %v1104 = vld [vmem:[%s252 + $0x50] sm:$0xf]
        %v1105 = vld [vmem:[%s252 + $0x54] sm:$0xf]
        %v1106 = vld [vmem:[%s252 + $0x58] sm:$0xf]
        %v1107 = vld [vmem:[%s252 + $0x5c] sm:$0xf]
        %v1108 = vld [vmem:[%s252 + $0x60] sm:$0xf]
        %v1109 = vld [vmem:[%s252 + $0x64] sm:$0xf]
        %v1110 = vld [vmem:[%s252 + $0x68] sm:$0xf]
        %v1111 = vld [vmem:[%s252 + $0x6c] sm:$0xf]
        %v1112 = vld [vmem:[%s252 + $0x70] sm:$0xf]
        %v1113 = vld [vmem:[%s252 + $0x74] sm:$0xf]
        %v1114 = vld [vmem:[%s252 + $0x78] sm:$0xf]
        %v1115 = vld [vmem:[%s252 + $0x7c] sm:$0xf]
        %v1116 = vld [vmem:[%s252 + $0x80] sm:$0xf]
        %v1117 = vld [vmem:[%s252 + $0x84] sm:$0xf]
        %v1118 = vld [vmem:[%s252 + $0x88] sm:$0xf]
        %v1119 = vld [vmem:[%s252 + $0x8c] sm:$0xf]
        %s1120 = scalar_lea.vmem [#allocation6], 16
        %v1121 = vld [vmem:[%s1120] sm:$0xf]
        %v1122 = vld [vmem:[%s1120 + $0x4] sm:$0x1]
        %v1155 = vunpack.c.l.b16 %v1088
        %v1156 = vunpack.c.l.b16 %v1089
        %v1157 = vunpack.c.l.b16 %v1090
        %v1158 = vunpack.c.l.b16 %v1091
        %v1159 = vunpack.c.l.b16 %v1092
        %v1160 = vunpack.c.l.b16 %v1093
        %v1161 = vunpack.c.l.b16 %v1094
        %v1162 = vunpack.c.l.b16 %v1095
        %v1163 = vunpack.c.l.b16 %v1096
        %v1164 = vunpack.c.l.b16 %v1097
        %v1165 = vunpack.c.l.b16 %v1098
        %v1166 = vunpack.c.l.b16 %v1099
        %v1167 = vunpack.c.l.b16 %v1100
        %v1168 = vunpack.c.l.b16 %v1101
        %v1169 = vunpack.c.l.b16 %v1102
        %v1170 = vunpack.c.l.b16 %v1103
        %v1171 = vunpack.c.l.b16 %v1104
        %v1172 = vunpack.c.l.b16 %v1105
        %v1173 = vunpack.c.l.b16 %v1106
        %v1174 = vunpack.c.l.b16 %v1107
        %v1175 = vunpack.c.l.b16 %v1108
        %v1176 = vunpack.c.l.b16 %v1109
        %v1177 = vunpack.c.l.b16 %v1110
        %v1178 = vunpack.c.l.b16 %v1111
        %v1179 = vunpack.c.l.b16 %v1112
        %v1180 = vunpack.c.l.b16 %v1113
        %v1181 = vunpack.c.l.b16 %v1114
        %v1182 = vunpack.c.l.b16 %v1115
        %v1183 = vunpack.c.l.b16 %v1116
        %v1184 = vunpack.c.l.b16 %v1117
        %v1185 = vunpack.c.l.b16 %v1118
        %v1186 = vunpack.c.l.b16 %v1119
        %v1187 = vpack.c.b16 %v1156, %v1155
        %v1188 = vpack.c.b16 %v1158, %v1157
        %v1189 = vpack.c.b16 %v1160, %v1159
        %v1190 = vpack.c.b16 %v1162, %v1161
        %v1191 = vpack.c.b16 %v1164, %v1163
        %v1192 = vpack.c.b16 %v1166, %v1165
        %v1193 = vpack.c.b16 %v1168, %v1167
        %v1194 = vpack.c.b16 %v1170, %v1169
        %v1195 = vpack.c.b16 %v1172, %v1171
        %v1196 = vpack.c.b16 %v1174, %v1173
        %v1197 = vpack.c.b16 %v1176, %v1175
        %v1198 = vpack.c.b16 %v1178, %v1177
        %v1199 = vpack.c.b16 %v1180, %v1179
        %v1200 = vpack.c.b16 %v1182, %v1181
        %v1201 = vpack.c.b16 %v1184, %v1183
        %v1202 = vpack.c.b16 %v1186, %v1185
        %v1205 = vunpack.c.l.b16 %v1121
        %v1206 = vunpack.c.l.b16 %v1122
        %v1207 = vpack.c.b16 %v1206, %v1205
        %v1209 = vsel %vm410, %v1187, 0
        %v1212 = vsel %vm410, %v1188, 0
        %v1215 = vsel %vm410, %v1189, 0
        %v1218 = vsel %vm410, %v1190, 0
        %v1221 = vsel %vm410, %v1191, 0
        %v1224 = vsel %vm410, %v1192, 0
        %v1227 = vsel %vm410, %v1193, 0
        %v1230 = vsel %vm410, %v1194, 0
        %v1233 = vsel %vm410, %v1195, 0
        %v1236 = vsel %vm410, %v1196, 0
        %v1239 = vsel %vm410, %v1197, 0
        %v1242 = vsel %vm410, %v1198, 0
        %v1245 = vsel %vm410, %v1199, 0
        %v1248 = vsel %vm410, %v1200, 0
        %v1251 = vsel %vm410, %v1201, 0
        %v1254 = vsel %vm410, %v1202, 0
        %v1257 = vand.u32 %v1207, %v462
        %1259 = vmatprep.subr.bf16.mxu0 0
        %1260 = vmatpush1.bf16.msra.mxu0 %v1257
        %1261 = vmatprep.subr.bf16.mxu0 0
        %1262 = vmatpush1.bf16.msra.mxu0 0
        %1263 = vmatprep.subr.bf16.mxu0 0
        %1264 = vmatpush1.bf16.msra.mxu0 0
        %1265 = vmatprep.subr.bf16.mxu0 0
        %1266 = vmatpush1.bf16.msra.mxu0 0
        %1267 = vmatprep.subr.bf16.mxu0 0
        %1268 = vmatpush1.bf16.msra.mxu0 0
        %1269 = vmatprep.subr.bf16.mxu0 0
        %1270 = vmatpush1.bf16.msra.mxu0 0
        %1271 = vmatprep.subr.bf16.mxu0 0
        %1272 = vmatpush1.bf16.msra.mxu0 0
        %1273 = vmatprep.subr.bf16.mxu0 0
        %1274 = vmatpush1.bf16.msra.mxu0 0
        %1275 = vmatprep.subr.bf16.mxu0 0
        %1276 = vmatpush1.bf16.msra.mxu0 0
        %1277 = vmatprep.subr.bf16.mxu0 0
        %1278 = vmatpush1.bf16.msra.mxu0 0
        %1279 = vmatprep.subr.bf16.mxu0 0
        %1280 = vmatpush1.bf16.msra.mxu0 0
        %1281 = vmatprep.subr.bf16.mxu0 0
        %1282 = vmatpush1.bf16.msra.mxu0 0
        %1283 = vmatprep.subr.bf16.mxu0 0
        %1284 = vmatpush1.bf16.msra.mxu0 0
        %1285 = vmatprep.subr.bf16.mxu0 0
        %1286 = vmatpush1.bf16.msra.mxu0 0
        %1287 = vmatprep.subr.bf16.mxu0 0
        %1288 = vmatpush1.bf16.msra.mxu0 0
        %1289 = vmatprep.subr.bf16.mxu0 0
        %1290 = vmatpush1.bf16.msra.mxu0 0
        %1291 = vmatprep.mubr.bf16.mxu0 0
        %1292 = vmatmul.mubr.bf16.gmra.mrb[0].mxu0 %v1209
        %v1293 = vpop.f32.mrb[0].mxu0
        %v1294 = vadd.f32 0.0, %v1293
        %v1295 = vpop.f32.mrb[0].mxu0
        %v1296 = vpop.f32.mrb[0].mxu0
        %v1297 = vadd.f32 0.0, %v1296
        %v1298 = vpop.f32.mrb[0].mxu0
        %1299 = vmatprep.mubr.bf16.mxu0 0
        %1300 = vmatmul.mubr.bf16.gmra.mrb[0].mxu0 %v1212
        %v1301 = vpop.f32.mrb[0].mxu0
        %v1302 = vadd.f32 0.0, %v1301
        %v1303 = vpop.f32.mrb[0].mxu0
        %v1304 = vpop.f32.mrb[0].mxu0
        %v1305 = vadd.f32 0.0, %v1304
        %v1306 = vpop.f32.mrb[0].mxu0
        %1307 = vmatprep.mubr.bf16.mxu0 0
        %1308 = vmatmul.mubr.bf16.gmra.mrb[0].mxu0 %v1215
        %v1309 = vpop.f32.mrb[0].mxu0
        %v1310 = vadd.f32 0.0, %v1309
        %v1311 = vpop.f32.mrb[0].mxu0
        %v1312 = vpop.f32.mrb[0].mxu0
        %v1313 = vadd.f32 0.0, %v1312
        %v1314 = vpop.f32.mrb[0].mxu0
        %1315 = vmatprep.mubr.bf16.mxu0 0
        %1316 = vmatmul.mubr.bf16.gmra.mrb[0].mxu0 %v1218
        %v1317 = vpop.f32.mrb[0].mxu0
        %v1318 = vadd.f32 0.0, %v1317
        %v1319 = vpop.f32.mrb[0].mxu0
        %v1320 = vpop.f32.mrb[0].mxu0
        %v1321 = vadd.f32 0.0, %v1320
        %v1322 = vpop.f32.mrb[0].mxu0
        %1323 = vmatprep.mubr.bf16.mxu0 0
        %1324 = vmatmul.mubr.bf16.gmra.mrb[0].mxu0 %v1221
        %v1325 = vpop.f32.mrb[0].mxu0
        %v1326 = vadd.f32 0.0, %v1325
        %v1327 = vpop.f32.mrb[0].mxu0
        %v1328 = vpop.f32.mrb[0].mxu0
        %v1329 = vadd.f32 0.0, %v1328
        %v1330 = vpop.f32.mrb[0].mxu0
        %1331 = vmatprep.mubr.bf16.mxu0 0
        %1332 = vmatmul.mubr.bf16.gmra.mrb[0].mxu0 %v1224
        %v1333 = vpop.f32.mrb[0].mxu0
        %v1334 = vadd.f32 0.0, %v1333
        %v1335 = vpop.f32.mrb[0].mxu0
        %v1336 = vpop.f32.mrb[0].mxu0
        %v1337 = vadd.f32 0.0, %v1336
        %v1338 = vpop.f32.mrb[0].mxu0
        %1339 = vmatprep.mubr.bf16.mxu0 0
        %1340 = vmatmul.mubr.bf16.gmra.mrb[0].mxu0 %v1227
        %v1341 = vpop.f32.mrb[0].mxu0
        %v1342 = vadd.f32 0.0, %v1341
        %v1343 = vpop.f32.mrb[0].mxu0
        %v1344 = vpop.f32.mrb[0].mxu0
        %v1345 = vadd.f32 0.0, %v1344
        %v1346 = vpop.f32.mrb[0].mxu0
        %1347 = vmatprep.mubr.bf16.mxu0 0
        %1348 = vmatmul.mubr.bf16.gmra.mrb[0].mxu0 %v1230
        %v1349 = vpop.f32.mrb[0].mxu0
        %v1350 = vadd.f32 0.0, %v1349
        %v1351 = vpop.f32.mrb[0].mxu0
        %v1352 = vpop.f32.mrb[0].mxu0
        %v1353 = vadd.f32 0.0, %v1352
        %v1354 = vpop.f32.mrb[0].mxu0
        %1355 = vmatprep.mubr.bf16.mxu0 0
        %1356 = vmatmul.mubr.bf16.gmra.mrb[0].mxu0 %v1233
        %v1357 = vpop.f32.mrb[0].mxu0
        %v1358 = vadd.f32 0.0, %v1357
        %v1359 = vpop.f32.mrb[0].mxu0
        %v1360 = vpop.f32.mrb[0].mxu0
        %v1361 = vadd.f32 0.0, %v1360
        %v1362 = vpop.f32.mrb[0].mxu0
        %1363 = vmatprep.mubr.bf16.mxu0 0
        %1364 = vmatmul.mubr.bf16.gmra.mrb[0].mxu0 %v1236
        %v1365 = vpop.f32.mrb[0].mxu0
        %v1366 = vadd.f32 0.0, %v1365
        %v1367 = vpop.f32.mrb[0].mxu0
        %v1368 = vpop.f32.mrb[0].mxu0
        %v1369 = vadd.f32 0.0, %v1368
        %v1370 = vpop.f32.mrb[0].mxu0
        %1371 = vmatprep.mubr.bf16.mxu0 0
        %1372 = vmatmul.mubr.bf16.gmra.mrb[0].mxu0 %v1239
        %v1373 = vpop.f32.mrb[0].mxu0
        %v1374 = vadd.f32 0.0, %v1373
        %v1375 = vpop.f32.mrb[0].mxu0
        %v1376 = vpop.f32.mrb[0].mxu0
        %v1377 = vadd.f32 0.0, %v1376
        %v1378 = vpop.f32.mrb[0].mxu0
        %1379 = vmatprep.mubr.bf16.mxu0 0
        %1380 = vmatmul.mubr.bf16.gmra.mrb[0].mxu0 %v1242
        %v1381 = vpop.f32.mrb[0].mxu0
        %v1382 = vadd.f32 0.0, %v1381
        %v1383 = vpop.f32.mrb[0].mxu0
        %v1384 = vpop.f32.mrb[0].mxu0
        %v1385 = vadd.f32 0.0, %v1384
        %v1386 = vpop.f32.mrb[0].mxu0
        %1387 = vmatprep.mubr.bf16.mxu0 0
        %1388 = vmatmul.mubr.bf16.gmra.mrb[0].mxu0 %v1245
        %v1389 = vpop.f32.mrb[0].mxu0
        %v1390 = vadd.f32 0.0, %v1389
        %v1391 = vpop.f32.mrb[0].mxu0
        %v1392 = vpop.f32.mrb[0].mxu0
        %v1393 = vadd.f32 0.0, %v1392
        %v1394 = vpop.f32.mrb[0].mxu0
        %1395 = vmatprep.mubr.bf16.mxu0 0
        %1396 = vmatmul.mubr.bf16.gmra.mrb[0].mxu0 %v1248
        %v1397 = vpop.f32.mrb[0].mxu0
        %v1398 = vadd.f32 0.0, %v1397
        %v1399 = vpop.f32.mrb[0].mxu0
        %v1400 = vpop.f32.mrb[0].mxu0
        %v1401 = vadd.f32 0.0, %v1400
        %v1402 = vpop.f32.mrb[0].mxu0
        %1403 = vmatprep.mubr.bf16.mxu0 0
        %1404 = vmatmul.mubr.bf16.gmra.mrb[0].mxu0 %v1251
        %v1405 = vpop.f32.mrb[0].mxu0
        %v1406 = vadd.f32 0.0, %v1405
        %v1407 = vpop.f32.mrb[0].mxu0
        %v1408 = vpop.f32.mrb[0].mxu0
        %v1409 = vadd.f32 0.0, %v1408
        %v1410 = vpop.f32.mrb[0].mxu0
        %1411 = vmatprep.mubr.bf16.mxu0 0
        %1412 = vmatmul.mubr.bf16.gmra.mrb[0].mxu0 %v1254
        %v1413 = vpop.f32.mrb[0].mxu0
        %v1414 = vadd.f32 0.0, %v1413
        %v1415 = vpop.f32.mrb[0].mxu0
        %v1416 = vpop.f32.mrb[0].mxu0
        %v1417 = vadd.f32 0.0, %v1416
        %v1418 = vpop.f32.mrb[0].mxu0
        %1419 = vdwg.mxu0
        %v1420 = vld [vmem:[#allocation2] sm:$0xff]
        %v1421 = vld [vmem:[#allocation2 + $0x8] sm:$0xff]
        %v1422 = vld [vmem:[#allocation2 + $0x10] sm:$0xff]
        %v1423 = vld [vmem:[#allocation2 + $0x18] sm:$0xff]
        %v1424 = vld [vmem:[#allocation2 + $0x20] sm:$0xff]
        %v1425 = vld [vmem:[#allocation2 + $0x28] sm:$0xff]
        %v1426 = vld [vmem:[#allocation2 + $0x30] sm:$0xff]
        %v1427 = vld [vmem:[#allocation2 + $0x38] sm:$0xff]
        %v1428 = vld [vmem:[#allocation2 + $0x40] sm:$0xff]
        %v1429 = vld [vmem:[#allocation2 + $0x48] sm:$0xff]
        %v1430 = vld [vmem:[#allocation2 + $0x50] sm:$0xff]
        %v1431 = vld [vmem:[#allocation2 + $0x58] sm:$0xff]
        %v1432 = vld [vmem:[#allocation2 + $0x60] sm:$0xff]
        %v1433 = vld [vmem:[#allocation2 + $0x68] sm:$0xff]
        %v1434 = vld [vmem:[#allocation2 + $0x70] sm:$0xff]
        %v1435 = vld [vmem:[#allocation2 + $0x78] sm:$0xff]
        %v1436 = vld [vmem:[#allocation2 + $0x80] sm:$0xff]
        %v1437 = vld [vmem:[#allocation2 + $0x88] sm:$0xff]
        %v1438 = vld [vmem:[#allocation2 + $0x90] sm:$0xff]
        %v1439 = vld [vmem:[#allocation2 + $0x98] sm:$0xff]
        %v1440 = vld [vmem:[#allocation2 + $0xa0] sm:$0xff]
        %v1441 = vld [vmem:[#allocation2 + $0xa8] sm:$0xff]
        %v1442 = vld [vmem:[#allocation2 + $0xb0] sm:$0xff]
        %v1443 = vld [vmem:[#allocation2 + $0xb8] sm:$0xff]
        %v1444 = vld [vmem:[#allocation2 + $0xc0] sm:$0xff]
        %v1445 = vld [vmem:[#allocation2 + $0xc8] sm:$0xff]
        %v1446 = vld [vmem:[#allocation2 + $0xd0] sm:$0xff]
        %v1447 = vld [vmem:[#allocation2 + $0xd8] sm:$0xff]
        %v1448 = vld [vmem:[#allocation2 + $0xe0] sm:$0xff]
        %v1449 = vld [vmem:[#allocation2 + $0xe8] sm:$0xff]
        %v1450 = vld [vmem:[#allocation2 + $0xf0] sm:$0xff]
        %v1451 = vld [vmem:[#allocation2 + $0xf8] sm:$0xff]
        %v1452 = vadd.f32 %v1420, %v1294
        %v1453 = vadd.f32 %v1421, %v1297
        %v1454 = vadd.f32 %v1422, %v1302
        %v1455 = vadd.f32 %v1423, %v1305
        %v1456 = vadd.f32 %v1424, %v1310
        %v1457 = vadd.f32 %v1425, %v1313
        %v1458 = vadd.f32 %v1426, %v1318
        %v1459 = vadd.f32 %v1427, %v1321
        %v1460 = vadd.f32 %v1428, %v1326
        %v1461 = vadd.f32 %v1429, %v1329
        %v1462 = vadd.f32 %v1430, %v1334
        %v1463 = vadd.f32 %v1431, %v1337
        %v1464 = vadd.f32 %v1432, %v1342
        %v1465 = vadd.f32 %v1433, %v1345
        %v1466 = vadd.f32 %v1434, %v1350
        %v1467 = vadd.f32 %v1435, %v1353
        %v1468 = vadd.f32 %v1436, %v1358
        %v1469 = vadd.f32 %v1437, %v1361
        %v1470 = vadd.f32 %v1438, %v1366
        %v1471 = vadd.f32 %v1439, %v1369
        %v1472 = vadd.f32 %v1440, %v1374
        %v1473 = vadd.f32 %v1441, %v1377
        %v1474 = vadd.f32 %v1442, %v1382
        %v1475 = vadd.f32 %v1443, %v1385
        %v1476 = vadd.f32 %v1444, %v1390
        %v1477 = vadd.f32 %v1445, %v1393
        %v1478 = vadd.f32 %v1446, %v1398
        %v1479 = vadd.f32 %v1447, %v1401
        %v1480 = vadd.f32 %v1448, %v1406
        %v1481 = vadd.f32 %v1449, %v1409
        %v1482 = vadd.f32 %v1450, %v1414
        %v1483 = vadd.f32 %v1451, %v1417
        %1484 = vst.msk [vmem:[#allocation2] sm:$0xff] %vm627, %v1452
        %1485 = vst.msk [vmem:[#allocation2 + $0x8] sm:$0xff] %vm627, %v1453
        %1486 = vst.msk [vmem:[#allocation2 + $0x10] sm:$0xff] %vm627, %v1454
        %1487 = vst.msk [vmem:[#allocation2 + $0x18] sm:$0xff] %vm627, %v1455
        %1488 = vst.msk [vmem:[#allocation2 + $0x20] sm:$0xff] %vm627, %v1456
        %1489 = vst.msk [vmem:[#allocation2 + $0x28] sm:$0xff] %vm627, %v1457
        %1490 = vst.msk [vmem:[#allocation2 + $0x30] sm:$0xff] %vm627, %v1458
        %1491 = vst.msk [vmem:[#allocation2 + $0x38] sm:$0xff] %vm627, %v1459
        %1492 = vst.msk [vmem:[#allocation2 + $0x40] sm:$0xff] %vm627, %v1460
        %1493 = vst.msk [vmem:[#allocation2 + $0x48] sm:$0xff] %vm627, %v1461
        %1494 = vst.msk [vmem:[#allocation2 + $0x50] sm:$0xff] %vm627, %v1462
        %1495 = vst.msk [vmem:[#allocation2 + $0x58] sm:$0xff] %vm627, %v1463
        %1496 = vst.msk [vmem:[#allocation2 + $0x60] sm:$0xff] %vm627, %v1464
        %1497 = vst.msk [vmem:[#allocation2 + $0x68] sm:$0xff] %vm627, %v1465
        %1498 = vst.msk [vmem:[#allocation2 + $0x70] sm:$0xff] %vm627, %v1466
        %1499 = vst.msk [vmem:[#allocation2 + $0x78] sm:$0xff] %vm627, %v1467
        %1500 = vst.msk [vmem:[#allocation2 + $0x80] sm:$0xff] %vm627, %v1468
        %1501 = vst.msk [vmem:[#allocation2 + $0x88] sm:$0xff] %vm627, %v1469
        %1502 = vst.msk [vmem:[#allocation2 + $0x90] sm:$0xff] %vm627, %v1470
        %1503 = vst.msk [vmem:[#allocation2 + $0x98] sm:$0xff] %vm627, %v1471
        %1504 = vst.msk [vmem:[#allocation2 + $0xa0] sm:$0xff] %vm627, %v1472
        %1505 = vst.msk [vmem:[#allocation2 + $0xa8] sm:$0xff] %vm627, %v1473
        %1506 = vst.msk [vmem:[#allocation2 + $0xb0] sm:$0xff] %vm627, %v1474
        %1507 = vst.msk [vmem:[#allocation2 + $0xb8] sm:$0xff] %vm627, %v1475
        %1508 = vst.msk [vmem:[#allocation2 + $0xc0] sm:$0xff] %vm627, %v1476
        %1509 = vst.msk [vmem:[#allocation2 + $0xc8] sm:$0xff] %vm627, %v1477
        %1510 = vst.msk [vmem:[#allocation2 + $0xd0] sm:$0xff] %vm627, %v1478
        %1511 = vst.msk [vmem:[#allocation2 + $0xd8] sm:$0xff] %vm627, %v1479
        %1512 = vst.msk [vmem:[#allocation2 + $0xe0] sm:$0xff] %vm627, %v1480
        %1513 = vst.msk [vmem:[#allocation2 + $0xe8] sm:$0xff] %vm627, %v1481
        %1514 = vst.msk [vmem:[#allocation2 + $0xf0] sm:$0xff] %vm627, %v1482
        %1515 = vst.msk [vmem:[#allocation2 + $0xf8] sm:$0xff] %vm627, %v1483
        %v1516 = vld [vmem:[#allocation2] sm:$0xff]
        %v1517 = vld [vmem:[#allocation2 + $0x8] sm:$0xff]
        %v1518 = vld [vmem:[#allocation2 + $0x10] sm:$0xff]
        %v1519 = vld [vmem:[#allocation2 + $0x18] sm:$0xff]
        %v1520 = vld [vmem:[#allocation2 + $0x20] sm:$0xff]
        %v1521 = vld [vmem:[#allocation2 + $0x28] sm:$0xff]
        %v1522 = vld [vmem:[#allocation2 + $0x30] sm:$0xff]
        %v1523 = vld [vmem:[#allocation2 + $0x38] sm:$0xff]
        %v1524 = vld [vmem:[#allocation2 + $0x40] sm:$0xff]
        %v1525 = vld [vmem:[#allocation2 + $0x48] sm:$0xff]
        %v1526 = vld [vmem:[#allocation2 + $0x50] sm:$0xff]
        %v1527 = vld [vmem:[#allocation2 + $0x58] sm:$0xff]
        %v1528 = vld [vmem:[#allocation2 + $0x60] sm:$0xff]
        %v1529 = vld [vmem:[#allocation2 + $0x68] sm:$0xff]
        %v1530 = vld [vmem:[#allocation2 + $0x70] sm:$0xff]
        %v1531 = vld [vmem:[#allocation2 + $0x78] sm:$0xff]
        %v1532 = vld [vmem:[#allocation2 + $0x80] sm:$0xff]
        %v1533 = vld [vmem:[#allocation2 + $0x88] sm:$0xff]
        %v1534 = vld [vmem:[#allocation2 + $0x90] sm:$0xff]
        %v1535 = vld [vmem:[#allocation2 + $0x98] sm:$0xff]
        %v1536 = vld [vmem:[#allocation2 + $0xa0] sm:$0xff]
        %v1537 = vld [vmem:[#allocation2 + $0xa8] sm:$0xff]
        %v1538 = vld [vmem:[#allocation2 + $0xb0] sm:$0xff]
        %v1539 = vld [vmem:[#allocation2 + $0xb8] sm:$0xff]
        %v1540 = vld [vmem:[#allocation2 + $0xc0] sm:$0xff]
        %v1541 = vld [vmem:[#allocation2 + $0xc8] sm:$0xff]
        %v1542 = vld [vmem:[#allocation2 + $0xd0] sm:$0xff]
        %v1543 = vld [vmem:[#allocation2 + $0xd8] sm:$0xff]
        %v1544 = vld [vmem:[#allocation2 + $0xe0] sm:$0xff]
        %v1545 = vld [vmem:[#allocation2 + $0xe8] sm:$0xff]
        %v1546 = vld [vmem:[#allocation2 + $0xf0] sm:$0xff]
        %v1547 = vld [vmem:[#allocation2 + $0xf8] sm:$0xff]
        %v1548 = vpack.c.bf16 %v1517, %v1516
        %v1549 = vpack.c.bf16 %v1519, %v1518
        %v1550 = vpack.c.bf16 %v1521, %v1520
        %v1551 = vpack.c.bf16 %v1523, %v1522
        %v1552 = vpack.c.bf16 %v1525, %v1524
        %v1553 = vpack.c.bf16 %v1527, %v1526
        %v1554 = vpack.c.bf16 %v1529, %v1528
        %v1555 = vpack.c.bf16 %v1531, %v1530
        %v1556 = vpack.c.bf16 %v1533, %v1532
        %v1557 = vpack.c.bf16 %v1535, %v1534
        %v1558 = vpack.c.bf16 %v1537, %v1536
        %v1559 = vpack.c.bf16 %v1539, %v1538
        %v1560 = vpack.c.bf16 %v1541, %v1540
        %v1561 = vpack.c.bf16 %v1543, %v1542
        %v1562 = vpack.c.bf16 %v1545, %v1544
        %v1563 = vpack.c.bf16 %v1547, %v1546
        %v1580 = vunpack.c.l.b16 %v1548
        %v1581 = vunpack.c.h.b16 %v1548
        %v1582 = vunpack.c.l.b16 %v1549
        %v1583 = vunpack.c.h.b16 %v1549
        %v1584 = vunpack.c.l.b16 %v1550
        %v1585 = vunpack.c.h.b16 %v1550
        %v1586 = vunpack.c.l.b16 %v1551
        %v1587 = vunpack.c.h.b16 %v1551
        %v1588 = vunpack.c.l.b16 %v1552
        %v1589 = vunpack.c.h.b16 %v1552
        %v1590 = vunpack.c.l.b16 %v1553
        %v1591 = vunpack.c.h.b16 %v1553
        %v1592 = vunpack.c.l.b16 %v1554
        %v1593 = vunpack.c.h.b16 %v1554
        %v1594 = vunpack.c.l.b16 %v1555
        %v1595 = vunpack.c.h.b16 %v1555
        %v1596 = vunpack.c.l.b16 %v1556
        %v1597 = vunpack.c.h.b16 %v1556
        %v1598 = vunpack.c.l.b16 %v1557
        %v1599 = vunpack.c.h.b16 %v1557
        %v1600 = vunpack.c.l.b16 %v1558
        %v1601 = vunpack.c.h.b16 %v1558
        %v1602 = vunpack.c.l.b16 %v1559
        %v1603 = vunpack.c.h.b16 %v1559
        %v1604 = vunpack.c.l.b16 %v1560
        %v1605 = vunpack.c.h.b16 %v1560
        %v1606 = vunpack.c.l.b16 %v1561
        %v1607 = vunpack.c.h.b16 %v1561
        %v1608 = vunpack.c.l.b16 %v1562
        %v1609 = vunpack.c.h.b16 %v1562
        %v1610 = vunpack.c.l.b16 %v1563
        %v1611 = vunpack.c.h.b16 %v1563
        %v1612 = vpack.c.b16 %v1580, %v1580
        %v1613 = vpack.c.b16 %v1581, %v1581
        %v1614 = vpack.c.b16 %v1582, %v1582
        %v1615 = vpack.c.b16 %v1583, %v1583
        %v1616 = vpack.c.b16 %v1584, %v1584
        %v1617 = vpack.c.b16 %v1585, %v1585
        %v1618 = vpack.c.b16 %v1586, %v1586
        %v1619 = vpack.c.b16 %v1587, %v1587
        %v1620 = vpack.c.b16 %v1588, %v1588
        %v1621 = vpack.c.b16 %v1589, %v1589
        %v1622 = vpack.c.b16 %v1590, %v1590
        %v1623 = vpack.c.b16 %v1591, %v1591
        %v1624 = vpack.c.b16 %v1592, %v1592
        %v1625 = vpack.c.b16 %v1593, %v1593
        %v1626 = vpack.c.b16 %v1594, %v1594
        %v1627 = vpack.c.b16 %v1595, %v1595
        %v1628 = vpack.c.b16 %v1596, %v1596
        %v1629 = vpack.c.b16 %v1597, %v1597
        %v1630 = vpack.c.b16 %v1598, %v1598
        %v1631 = vpack.c.b16 %v1599, %v1599
        %v1632 = vpack.c.b16 %v1600, %v1600
        %v1633 = vpack.c.b16 %v1601, %v1601
        %v1634 = vpack.c.b16 %v1602, %v1602
        %v1635 = vpack.c.b16 %v1603, %v1603
        %v1636 = vpack.c.b16 %v1604, %v1604
        %v1637 = vpack.c.b16 %v1605, %v1605
        %v1638 = vpack.c.b16 %v1606, %v1606
        %v1639 = vpack.c.b16 %v1607, %v1607
        %v1640 = vpack.c.b16 %v1608, %v1608
        %v1641 = vpack.c.b16 %v1609, %v1609
        %v1642 = vpack.c.b16 %v1610, %v1610
        %v1643 = vpack.c.b16 %v1611, %v1611
        %vm1676 = vcmask 519168
        %1677 = vst.msk [vmem:[%s276] sm:$0xf] %vm1676, %v1612
        %1678 = vst.msk [vmem:[%s276 + $0x4] sm:$0xf] %vm1676, %v1613
        %1679 = vst.msk [vmem:[%s276 + $0x8] sm:$0xf] %vm1676, %v1614
        %1680 = vst.msk [vmem:[%s276 + $0xc] sm:$0xf] %vm1676, %v1615
        %1681 = vst.msk [vmem:[%s276 + $0x10] sm:$0xf] %vm1676, %v1616
        %1682 = vst.msk [vmem:[%s276 + $0x14] sm:$0xf] %vm1676, %v1617
        %1683 = vst.msk [vmem:[%s276 + $0x18] sm:$0xf] %vm1676, %v1618
        %1684 = vst.msk [vmem:[%s276 + $0x1c] sm:$0xf] %vm1676, %v1619
        %1685 = vst.msk [vmem:[%s276 + $0x20] sm:$0xf] %vm1676, %v1620
        %1686 = vst.msk [vmem:[%s276 + $0x24] sm:$0xf] %vm1676, %v1621
        %1687 = vst.msk [vmem:[%s276 + $0x28] sm:$0xf] %vm1676, %v1622
        %1688 = vst.msk [vmem:[%s276 + $0x2c] sm:$0xf] %vm1676, %v1623
        %1689 = vst.msk [vmem:[%s276 + $0x30] sm:$0xf] %vm1676, %v1624
        %1690 = vst.msk [vmem:[%s276 + $0x34] sm:$0xf] %vm1676, %v1625
        %1691 = vst.msk [vmem:[%s276 + $0x38] sm:$0xf] %vm1676, %v1626
        %1692 = vst.msk [vmem:[%s276 + $0x3c] sm:$0xf] %vm1676, %v1627
        %1693 = vst.msk [vmem:[%s276 + $0x40] sm:$0xf] %vm1676, %v1628
        %1694 = vst.msk [vmem:[%s276 + $0x44] sm:$0xf] %vm1676, %v1629
        %1695 = vst.msk [vmem:[%s276 + $0x48] sm:$0xf] %vm1676, %v1630
        %1696 = vst.msk [vmem:[%s276 + $0x4c] sm:$0xf] %vm1676, %v1631
        %1697 = vst.msk [vmem:[%s276 + $0x50] sm:$0xf] %vm1676, %v1632
        %1698 = vst.msk [vmem:[%s276 + $0x54] sm:$0xf] %vm1676, %v1633
        %1699 = vst.msk [vmem:[%s276 + $0x58] sm:$0xf] %vm1676, %v1634
        %1700 = vst.msk [vmem:[%s276 + $0x5c] sm:$0xf] %vm1676, %v1635
        %1701 = vst.msk [vmem:[%s276 + $0x60] sm:$0xf] %vm1676, %v1636
        %1702 = vst.msk [vmem:[%s276 + $0x64] sm:$0xf] %vm1676, %v1637
        %1703 = vst.msk [vmem:[%s276 + $0x68] sm:$0xf] %vm1676, %v1638
        %1704 = vst.msk [vmem:[%s276 + $0x6c] sm:$0xf] %vm1676, %v1639
        %1705 = vst.msk [vmem:[%s276 + $0x70] sm:$0xf] %vm1676, %v1640
        %1706 = vst.msk [vmem:[%s276 + $0x74] sm:$0xf] %vm1676, %v1641
        %1707 = vst.msk [vmem:[%s276 + $0x78] sm:$0xf] %vm1676, %v1642
        %1708 = vst.msk [vmem:[%s276 + $0x7c] sm:$0xf] %vm1676, %v1643
        %v1709 = vsel %vm627, %v1516, 0.0
        %v1710 = vsel %vm627, %v1517, 0.0
        %v1711 = vadd.f32 %v1709, %v1710
        %v1712 = vsel %vm627, %v1518, 0.0
        %v1713 = vadd.f32 %v1711, %v1712
        %v1714 = vsel %vm627, %v1519, 0.0
        %v1715 = vadd.f32 %v1713, %v1714
        %v1716 = vsel %vm627, %v1520, 0.0
        %v1717 = vadd.f32 %v1715, %v1716
        %v1718 = vsel %vm627, %v1521, 0.0
        %v1719 = vadd.f32 %v1717, %v1718
        %v1720 = vsel %vm627, %v1522, 0.0
        %v1721 = vadd.f32 %v1719, %v1720
        %v1722 = vsel %vm627, %v1523, 0.0
        %v1723 = vadd.f32 %v1721, %v1722
        %v1724 = vsel %vm627, %v1524, 0.0
        %v1725 = vadd.f32 %v1723, %v1724
        %v1726 = vsel %vm627, %v1525, 0.0
        %v1727 = vadd.f32 %v1725, %v1726
        %v1728 = vsel %vm627, %v1526, 0.0
        %v1729 = vadd.f32 %v1727, %v1728
        %v1730 = vsel %vm627, %v1527, 0.0
        %v1731 = vadd.f32 %v1729, %v1730
        %v1732 = vsel %vm627, %v1528, 0.0
        %v1733 = vadd.f32 %v1731, %v1732
        %v1734 = vsel %vm627, %v1529, 0.0
        %v1735 = vadd.f32 %v1733, %v1734
        %v1736 = vsel %vm627, %v1530, 0.0
        %v1737 = vadd.f32 %v1735, %v1736
        %v1738 = vsel %vm627, %v1531, 0.0
        %v1739 = vadd.f32 %v1737, %v1738
        %v1740 = vsel %vm627, %v1532, 0.0
        %v1741 = vadd.f32 %v1739, %v1740
        %v1742 = vsel %vm627, %v1533, 0.0
        %v1743 = vadd.f32 %v1741, %v1742
        %v1744 = vsel %vm627, %v1534, 0.0
        %v1745 = vadd.f32 %v1743, %v1744
        %v1746 = vsel %vm627, %v1535, 0.0
        %v1747 = vadd.f32 %v1745, %v1746
        %v1748 = vsel %vm627, %v1536, 0.0
        %v1749 = vadd.f32 %v1747, %v1748
        %v1750 = vsel %vm627, %v1537, 0.0
        %v1751 = vadd.f32 %v1749, %v1750
        %v1752 = vsel %vm627, %v1538, 0.0
        %v1753 = vadd.f32 %v1751, %v1752
        %v1754 = vsel %vm627, %v1539, 0.0
        %v1755 = vadd.f32 %v1753, %v1754
        %v1756 = vsel %vm627, %v1540, 0.0
        %v1757 = vadd.f32 %v1755, %v1756
        %v1758 = vsel %vm627, %v1541, 0.0
        %v1759 = vadd.f32 %v1757, %v1758
        %v1760 = vsel %vm627, %v1542, 0.0
        %v1761 = vadd.f32 %v1759, %v1760
        %v1762 = vsel %vm627, %v1543, 0.0
        %v1763 = vadd.f32 %v1761, %v1762
        %v1764 = vsel %vm627, %v1544, 0.0
        %v1765 = vadd.f32 %v1763, %v1764
        %v1766 = vsel %vm627, %v1545, 0.0
        %v1767 = vadd.f32 %v1765, %v1766
        %v1768 = vsel %vm627, %v1546, 0.0
        %v1769 = vadd.f32 %v1767, %v1768
        %v1770 = vsel %vm627, %v1547, 0.0
        %v1771 = vadd.f32 %v1769, %v1770
        %v1772 = vrot.slane %v1771, 4
        %v1773 = vadd.f32 %v1771, %v1772
        %v1774 = vrot.slane %v1773, 2
        %v1775 = vadd.f32 %v1773, %v1774
        %v1776 = vrot.slane %v1775, 1
        %v1777 = vadd.f32 %v1775, %v1776
        %vm1778 = vcmask 516096
        %1779 = vst.msk [vmem:[%s282] sm:$0x1] %vm1778, %v1777
        %v1780 = vmul.f32 %v1516, %v1516
        %v1781 = vmul.f32 %v1517, %v1517
        %v1782 = vmul.f32 %v1518, %v1518
        %v1783 = vmul.f32 %v1519, %v1519
        %v1784 = vmul.f32 %v1520, %v1520
        %v1785 = vmul.f32 %v1521, %v1521
        %v1786 = vmul.f32 %v1522, %v1522
        %v1787 = vmul.f32 %v1523, %v1523
        %v1788 = vmul.f32 %v1524, %v1524
        %v1789 = vmul.f32 %v1525, %v1525
        %v1790 = vmul.f32 %v1526, %v1526
        %v1791 = vmul.f32 %v1527, %v1527
        %v1792 = vmul.f32 %v1528, %v1528
        %v1793 = vmul.f32 %v1529, %v1529
        %v1794 = vmul.f32 %v1530, %v1530
        %v1795 = vmul.f32 %v1531, %v1531
        %v1796 = vmul.f32 %v1532, %v1532
        %v1797 = vmul.f32 %v1533, %v1533
        %v1798 = vmul.f32 %v1534, %v1534
        %v1799 = vmul.f32 %v1535, %v1535
        %v1800 = vmul.f32 %v1536, %v1536
        %v1801 = vmul.f32 %v1537, %v1537
        %v1802 = vmul.f32 %v1538, %v1538
        %v1803 = vmul.f32 %v1539, %v1539
        %v1804 = vmul.f32 %v1540, %v1540
        %v1805 = vmul.f32 %v1541, %v1541
        %v1806 = vmul.f32 %v1542, %v1542
        %v1807 = vmul.f32 %v1543, %v1543
        %v1808 = vmul.f32 %v1544, %v1544
        %v1809 = vmul.f32 %v1545, %v1545
        %v1810 = vmul.f32 %v1546, %v1546
        %v1811 = vmul.f32 %v1547, %v1547
        %v1812 = vsel %vm627, %v1780, 0.0
        %v1813 = vsel %vm627, %v1781, 0.0
        %v1814 = vadd.f32 %v1812, %v1813
        %v1815 = vsel %vm627, %v1782, 0.0
        %v1816 = vadd.f32 %v1814, %v1815
        %v1817 = vsel %vm627, %v1783, 0.0
        %v1818 = vadd.f32 %v1816, %v1817
        %v1819 = vsel %vm627, %v1784, 0.0
        %v1820 = vadd.f32 %v1818, %v1819
        %v1821 = vsel %vm627, %v1785, 0.0
        %v1822 = vadd.f32 %v1820, %v1821
        %v1823 = vsel %vm627, %v1786, 0.0
        %v1824 = vadd.f32 %v1822, %v1823
        %v1825 = vsel %vm627, %v1787, 0.0
        %v1826 = vadd.f32 %v1824, %v1825
        %v1827 = vsel %vm627, %v1788, 0.0
        %v1828 = vadd.f32 %v1826, %v1827
        %v1829 = vsel %vm627, %v1789, 0.0
        %v1830 = vadd.f32 %v1828, %v1829
        %v1831 = vsel %vm627, %v1790, 0.0
        %v1832 = vadd.f32 %v1830, %v1831
        %v1833 = vsel %vm627, %v1791, 0.0
        %v1834 = vadd.f32 %v1832, %v1833
        %v1835 = vsel %vm627, %v1792, 0.0
        %v1836 = vadd.f32 %v1834, %v1835
        %v1837 = vsel %vm627, %v1793, 0.0
        %v1838 = vadd.f32 %v1836, %v1837
        %v1839 = vsel %vm627, %v1794, 0.0
        %v1840 = vadd.f32 %v1838, %v1839
        %v1841 = vsel %vm627, %v1795, 0.0
        %v1842 = vadd.f32 %v1840, %v1841
        %v1843 = vsel %vm627, %v1796, 0.0
        %v1844 = vadd.f32 %v1842, %v1843
        %v1845 = vsel %vm627, %v1797, 0.0
        %v1846 = vadd.f32 %v1844, %v1845
        %v1847 = vsel %vm627, %v1798, 0.0
        %v1848 = vadd.f32 %v1846, %v1847
        %v1849 = vsel %vm627, %v1799, 0.0
        %v1850 = vadd.f32 %v1848, %v1849
        %v1851 = vsel %vm627, %v1800, 0.0
        %v1852 = vadd.f32 %v1850, %v1851
        %v1853 = vsel %vm627, %v1801, 0.0
        %v1854 = vadd.f32 %v1852, %v1853
        %v1855 = vsel %vm627, %v1802, 0.0
        %v1856 = vadd.f32 %v1854, %v1855
        %v1857 = vsel %vm627, %v1803, 0.0
        %v1858 = vadd.f32 %v1856, %v1857
        %v1859 = vsel %vm627, %v1804, 0.0
        %v1860 = vadd.f32 %v1858, %v1859
        %v1861 = vsel %vm627, %v1805, 0.0
        %v1862 = vadd.f32 %v1860, %v1861
        %v1863 = vsel %vm627, %v1806, 0.0
        %v1864 = vadd.f32 %v1862, %v1863
        %v1865 = vsel %vm627, %v1807, 0.0
        %v1866 = vadd.f32 %v1864, %v1865
        %v1867 = vsel %vm627, %v1808, 0.0
        %v1868 = vadd.f32 %v1866, %v1867
        %v1869 = vsel %vm627, %v1809, 0.0
        %v1870 = vadd.f32 %v1868, %v1869
        %v1871 = vsel %vm627, %v1810, 0.0
        %v1872 = vadd.f32 %v1870, %v1871
        %v1873 = vsel %vm627, %v1811, 0.0
        %v1874 = vadd.f32 %v1872, %v1873
        %v1875 = vrot.slane %v1874, 4
        %v1876 = vadd.f32 %v1874, %v1875
        %v1877 = vrot.slane %v1876, 2
        %v1878 = vadd.f32 %v1876, %v1877
        %v1879 = vrot.slane %v1878, 1
        %v1880 = vadd.f32 %v1878, %v1879
        %1881 = vst.msk [vmem:[%s288] sm:$0x1] %vm1778, %v1880
        %s1882 = sand.u32 %s111, 1
        %s1883 = scalar_lea.sflag [#allocation5], %s1882
        %s1884 = sand.u32 %s111, 1
        %s1885 = smul.addr %s1884, 128
        %s1886 = scalar_lea.vmem [#allocation8], %s1885
        %s1887 = sand.u32 %s26, 1
        %s1888 = scalar_lea.sflag [#allocation10], %s1887
        %s1889 = sand.u32 %s141, 1
        %s1890 = scalar_lea.vmem [#allocation9], %s1889
        %s1891 = sand.u32 %s26, 1
        %s1892 = scalar_lea.sflag [#allocation10], %s1891
        %s1893 = sand.u32 %s171, 1
        %s1894 = scalar_lea.vmem [#allocation11], %s1893
        // Predicated region
        $region37: #{tpu_custom_call.1} parent=27 // pred_check
          %p1895 = pneg %p121
        $region38: #{tpu_custom_call.1} parent=27 // pred_check_branch
          %1897 = sbr.rel (%p1895) target = $region40
        $region39: #{tpu_custom_call.1} parent=27 // pred_region
          %s1898 = smul.u32 32, %s32
          %s1900 = ssub.s32 2048, 2048
          %1901 = vsyncadd %s1883, %s1900
          %s1902 = sadd.s32 %s33, %s1898
          %s1903 = smul.addr %s31, 32
          %s1904 = sadd.s32 %s1902, %s1903
          %s1905 = smul.addr %s1904, 64
          %s1906 = scalar_lea.hbm %s2, %s1905
          %s1907 = sshll.u32 %s1886, 4
          %s1908 = int_to_ptr.vmem [resolvable:$true] %s1907
          %1913 = dma.vmem_to_hbm [thread:$0]  %s1908, 2048, %s1906, %s1883, 64, 64, 4
        $region40: #{tpu_custom_call.1} parent=27 // pred_fallthru
          _
        // Predicated region
        $region41: #{tpu_custom_call.1} parent=27 // pred_check
          %p1914 = pneg %p151
        $region42: #{tpu_custom_call.1} parent=27 // pred_check_branch
          %1916 = sbr.rel (%p1914) target = $region44
        $region43: #{tpu_custom_call.1} parent=27 // pred_region
          %s1918 = ssub.s32 16, 16
          %1919 = vsyncadd %s1888, %s1918
          %s1920 = sadd.s32 %s33, %s32
          %s1921 = sadd.s32 %s1920, %s31
          %s1922 = smul.addr %s1921, 16
          %s1923 = scalar_lea.hbm %s3, %s1922
          %s1925 = sshll.u32 %s1890, 4
          %s1926 = int_to_ptr.vmem [resolvable:$true] %s1925
          %1928 = dma.vmem_to_hbm [thread:$0]  %s1926, 16, %s1923, %s1888
        $region44: #{tpu_custom_call.1} parent=27 // pred_fallthru
          _
        // Predicated region
        $region45: #{tpu_custom_call.1} parent=27 // pred_check
          %p1929 = pneg %p181
        $region46: #{tpu_custom_call.1} parent=27 // pred_check_branch
          %1931 = sbr.rel (%p1929) target = $region48
        $region47: #{tpu_custom_call.1} parent=27 // pred_region
          %s1933 = ssub.s32 16, 16
          %1934 = vsyncadd %s1892, %s1933
          %s1935 = sadd.s32 %s33, %s32
          %s1936 = sadd.s32 %s1935, %s31
          %s1937 = smul.addr %s1936, 16
          %s1938 = scalar_lea.hbm %s4, %s1937
          %s1940 = sshll.u32 %s1894, 4
          %s1941 = int_to_ptr.vmem [resolvable:$true] %s1940
          %1943 = dma.vmem_to_hbm [thread:$0]  %s1941, 16, %s1938, %s1892
        $region48: #{tpu_custom_call.1} parent=27 // pred_fallthru
          _
      $region28: #{tpu_custom_call.1} parent=5 // pred_fallthru
        _
      %p1944 = scmp.le.s32.totalorder 2, %s21
      // Predicated region
      $region49: #{tpu_custom_call.1} parent=5 // pred_check
        %p1945 = pneg %p1944
      $region50: #{tpu_custom_call.1} parent=5 // pred_check_branch
        %1947 = sbr.rel (%p1945) target = $region52
      $region51: #{tpu_custom_call.1} parent=5 // pred_region
        %s1948 = ssub.s32 %s21, 2
        // Predicated region
        $region53: #{tpu_custom_call.1} parent=51 // pred_check
          %p1949 = pneg %p127
        $region54: #{tpu_custom_call.1} parent=51 // pred_check_branch
          %1951 = sbr.rel (%p1949) target = $region56
        $region55: #{tpu_custom_call.1} parent=51 // pred_region
          %s1952 = sand.u32 %s112, 1
          %s1953 = scalar_lea.sflag [#allocation5], %s1952
          %s1954 = sand.u32 %s112, 1
          %s1955 = smul.addr %s1954, 128
          %s1956 = scalar_lea.vmem [#allocation8], %s1955
          %1957 = dma.done %s1953, 2048
        $region56: #{tpu_custom_call.1} parent=51 // pred_fallthru
          _
        // Predicated region
        $region57: #{tpu_custom_call.1} parent=51 // pred_check
          %p1958 = pneg %p157
        $region58: #{tpu_custom_call.1} parent=51 // pred_check_branch
          %1960 = sbr.rel (%p1958) target = $region60
        $region59: #{tpu_custom_call.1} parent=51 // pred_region
          %s1961 = sand.u32 %s27, 1
          %s1962 = scalar_lea.sflag [#allocation10], %s1961
          %s1963 = sand.u32 %s142, 1
          %s1964 = scalar_lea.vmem [#allocation9], %s1963
          %1965 = dma.done %s1962, 16
        $region60: #{tpu_custom_call.1} parent=51 // pred_fallthru
          _
        // Predicated region
        $region61: #{tpu_custom_call.1} parent=51 // pred_check
          %p1966 = pneg %p187
        $region62: #{tpu_custom_call.1} parent=51 // pred_check_branch
          %1968 = sbr.rel (%p1966) target = $region64
        $region63: #{tpu_custom_call.1} parent=51 // pred_region
          %s1969 = sand.u32 %s27, 1
          %s1970 = scalar_lea.sflag [#allocation10], %s1969
          %s1971 = sand.u32 %s172, 1
          %s1972 = scalar_lea.vmem [#allocation11], %s1971
          %1973 = dma.done %s1970, 16
        $region64: #{tpu_custom_call.1} parent=51 // pred_fallthru
          _
      $region52: #{tpu_custom_call.1} parent=5 // pred_fallthru
        _
    $region6: #{tpu_custom_call.1} parent=1 // loop_footer
      %s25 = sadd.s32 1, %s21
    $region7: #{tpu_custom_call.1} parent=1 // loop_footer_branch
      %20 = sbr.rel target = $region3
    $region8: #{tpu_custom_call.1} parent=1 // loop_exit
      _
    %1974 = vsyncpa [#allocation4], 1
    %s1975 = scalar_lea.sflag [#allocation4], 1
    %1976 = vsyncpa %s1975, 1
    %1977 = vsyncpa [#allocation7], 1
    %1978 = vsyncpa [#allocation5], 1
    %s1979 = scalar_lea.sflag [#allocation5], 1
    %1980 = vsyncpa %s1979, 1
    %1981 = vsyncpa [#allocation10], 1
    %s1982 = scalar_lea.sflag [#allocation10], 1
    %1983 = vsyncpa %s1982, 1

</llo_original>
